<compile_context>
chip_gen: v5e
topology: v5e:2x2
jax: 0.10.0
libtpu: 0.0.40
codegen_flags: <defaults>
</compile_context>

<pallas_src>
import functools

import jax
import jax.numpy as jnp
from jax import lax
from jax.experimental import pallas as pl
from jax.experimental.pallas import tpu as pltpu

# deparc vocabulary (fixed, deterministic)
ALIGN_IDX, OPPOSITE_IDX, SELF_IDX, NOREL_IDX = 0, 1, 2, 3

_LANES = 128
_BF16_SUBLANES = 16  # bf16 packs two rows per sublane; keep row offsets 16-aligned


def _round_up(x, m):
    return ((x + m - 1) // m) * m


# ----------------------------------------------------------------------------
# Pallas kernel: edge-tiled, output-accumulator forward.
# ----------------------------------------------------------------------------
def _syngcn_kernel(inp_ref,   # [Np, Dp] f32   padded node features (lanes [0,D), rest 0)
                   w_ref,     # [4, Dp, Dp] f32 augmented per-arc-type weights (value + gate lane)
                   btab_ref,  # [R2, Dp] f32    stacked (b_in | b_out) bias table (+ gate-bias lane)
                   gsel_ref,  # [Te, 1] i32     gather row = arc_slot*Np + src, -1 = no contribution
                   bsel_ref,  # [Te, 1] i32     bias row  = 4*Np + bias_idx,    -1 = no bias
                   tgt_ref,   # [1, Te] i32     target node per edge,           -1 = no scatter
                   out_ref,   # [Np, Dp] f32    resident accumulator / final output
                   hb_ref,    # [4*Np + R2, Dp] bf16 scratch: per-type transforms + bias rows
                   *, gate_lane):
    n_pad = inp_ref.shape[0]
    k_rows = hb_ref.shape[0]
    te = gsel_ref.shape[0]
    tile = pl.program_id(0)

    # ---- one-time work at the first edge tile: node transforms, bias rows, acc init
    @pl.when(tile == 0)
    def _init():
        inp = inp_ref[...]
        for t in range(4):   # arc types: align, opposite, self, norelation
            hb_ref[t * n_pad:(t + 1) * n_pad, :] = jnp.dot(
                inp, w_ref[t], preferred_element_type=jnp.float32
            ).astype(jnp.bfloat16)
        hb_ref[4 * n_pad:, :] = btab_ref[...].astype(jnp.bfloat16)
        out_ref[...] = jnp.zeros_like(out_ref)

    # ---- per edge tile: build the fused (gather + arc select + deprel bias) one-hot
    # in bf16 directly from the per-edge indices (no O(E*N) HBM stream, no f32 cast).
    col = lax.broadcasted_iota(jnp.int32, (te, k_rows), 1)
    esel = ((col == gsel_ref[...]) | (col == bsel_ref[...])).astype(jnp.bfloat16)

    # single bf16 MXU contraction: value + gate + deprel bias for every edge
    pre = jnp.dot(esel, hb_ref[...], preferred_element_type=jnp.float32)   # [Te, Dp] f32

    # gate lives in lane `gate_lane`; sigmoid on the EUP, broadcast over lanes
    gate = jax.nn.sigmoid(pre[:, gate_lane:gate_lane + 1])                 # [Te, 1]
    pot = (pre * gate).astype(jnp.bfloat16)                                # [Te, Dp]
    # NOTE: lane `gate_lane` of `pot` is g*sigmoid(g) garbage; it lands in out_ref's
    # gate lane and is sliced away by the wrapper (only lanes [:D] are returned).

    # scatter-add per-edge potentials onto target nodes (bf16 one-hot built in-kernel)
    row = lax.broadcasted_iota(jnp.int32, (n_pad, te), 0)
    smat = (row == tgt_ref[...]).astype(jnp.bfloat16)                      # [Np, Te]
    out_ref[...] += jnp.dot(smat, pot, preferred_element_type=jnp.float32)

    # ---- last edge tile: residual (f32, exact) + ReLU (dropout = identity in eval)
    @pl.when(tile == pl.num_programs(0) - 1)
    def _finish():
        out_ref[...] = jnp.maximum(out_ref[...] + inp_ref[...], 0.0)


# ----------------------------------------------------------------------------
# Wrapper: builds padded, fused operands and calls the kernel.
# ----------------------------------------------------------------------------
@functools.partial(jax.jit, static_argnames=("edge_tile",))
def syntactic_gcn_forward(inp, deprel_edge, deparc_edge, edge_index, params,
                          *, edge_tile=256):
    n, d = inp.shape
    e = edge_index.shape[1]
    r = params["b_in"].shape[0]

    n_pad = _round_up(max(n, 1), _BF16_SUBLANES)
    d_pad = _round_up(d + 1, _LANES)          # +1 spare lane for the fused gate
    gate_lane = d
    e_pad = _round_up(max(e, 1), edge_tile)
    r2 = _round_up(2 * r, _BF16_SUBLANES)
    k_rows = 4 * n_pad + r2

    src = edge_index[0].astype(jnp.int32)
    tgt = edge_index[1].astype(jnp.int32)
    rel = deprel_edge.astype(jnp.int32)

    # map deparc value -> arc slot {align:0, opposite:1, self:2, norelation:3}, else -1
    arc_ids = jnp.array([ALIGN_IDX, OPPOSITE_IDX, SELF_IDX, NOREL_IDX], jnp.int32)
    hit = deparc_edge[:, None] == arc_ids[None, :]
    arc_slot = jnp.where(hit.any(axis=1),
                         jnp.argmax(hit, axis=1).astype(jnp.int32),
                         jnp.int32(-1))

    # per-edge fused indices (tiny int32 side inputs; -1 means "no contribution")
    gsel = jnp.where(arc_slot >= 0, arc_slot * n_pad + src, -1)
    bsel = jnp.where(arc_slot == 0, 4 * n_pad + rel,
                     jnp.where(arc_slot == 1, 4 * n_pad + r + rel, -1))
    tsel = tgt

    def pad_edges(x):
        if e_pad > e:
            x = jnp.concatenate([x, jnp.full((e_pad - e,), -1, jnp.int32)])
        return x.astype(jnp.int32)

    gsel = pad_edges(gsel).reshape(e_pad, 1)      # edge along sublanes (row compares)
    bsel = pad_edges(bsel).reshape(e_pad, 1)
    tsel = pad_edges(tsel).reshape(1, e_pad)      # edge along lanes (scatter compares)

    # augmented per-type weights: value block in lanes [0, d), gate vector in lane d
    def aug(w, g):
        m = jnp.zeros((d_pad, d_pad), jnp.float32)
        m = m.at[:d, :d].set(w)
        m = m.at[:d, gate_lane].set(g[:, 0])
        return m

    w_aug = jnp.stack([
        aug(params["V_in"], params["V_in_gate"]),
        aug(params["V_out"], params["V_out_gate"]),
        aug(params["W_self_loop"], params["W_self_loop_gate"]),
        aug(params["W_no_relation"], params["W_no_relation_gate"]),
    ], axis=0)                                                        # [4, Dp, Dp]

    btab = jnp.zeros((r2, d_pad), jnp.float32)
    btab = btab.at[:r, :d].set(params["b_in"])
    btab = btab.at[:r, gate_lane].set(params["b_in_gate"][:, 0])
    btab = btab.at[r:2 * r, :d].set(params["b_out"])
    btab = btab.at[r:2 * r, gate_lane].set(params["b_out_gate"][:, 0])

    inp_pad = jnp.zeros((n_pad, d_pad), jnp.float32).at[:n, :d].set(inp)

    grid = (e_pad // edge_tile,)
    kernel = functools.partial(_syngcn_kernel, gate_lane=gate_lane)

    out_pad = pl.pallas_call(
        kernel,
        out_shape=jax.ShapeDtypeStruct((n_pad, d_pad), jnp.float32),
        grid_spec=pltpu.PrefetchScalarGridSpec(
            num_scalar_prefetch=0,
            grid=grid,
            in_specs=[
                pl.BlockSpec((n_pad, d_pad), lambda i: (0, 0)),        # inp (resident)
                pl.BlockSpec((4, d_pad, d_pad), lambda i: (0, 0, 0)),  # augmented weights
                pl.BlockSpec((r2, d_pad), lambda i: (0, 0)),           # bias table
                pl.BlockSpec((edge_tile, 1), lambda i: (i, 0)),        # gather row ids
                pl.BlockSpec((edge_tile, 1), lambda i: (i, 0)),        # bias row ids
                pl.BlockSpec((1, edge_tile), lambda i: (0, i)),        # target node ids
            ],
            out_specs=pl.BlockSpec((n_pad, d_pad), lambda i: (0, 0)),  # resident accumulator
            scratch_shapes=[pltpu.VMEM((k_rows, d_pad), jnp.bfloat16)],
        ),
        compiler_params=pltpu.CompilerParams(
            dimension_semantics=("arbitrary",),
            vmem_limit_bytes=48 * 1024 * 1024,   # > old 32 MiB, still < v7x's 64 MiB VMEM
        ),
    )(inp_pad, w_aug, btab, gsel, bsel, tsel)

    return out_pad[:n, :d]


# ----------------------------------------------------------------------------
# Pure-JAX f32 reference (edge-wise semantics matching the PyTorch module)
# ----------------------------------------------------------------------------
def reference_forward(inp, deprel_edge, deparc_edge, edge_index, params):
    n, d = inp.shape
    src, tgt = edge_index[0], edge_index[1]
    hp = jax.lax.Precision.HIGHEST
    neighbor = jnp.zeros((n, d), jnp.float32)

    def contrib(neighbor, arc_idx, w, wg, b=None, bg=None):
        m = (deparc_edge == arc_idx).astype(jnp.float32)[:, None]
        val = jnp.matmul(inp, w, precision=hp)[src]
        gate = jnp.matmul(inp, wg, precision=hp)[src]
        if b is not None:
            val = val + b[deprel_edge]
        if bg is not None:
            gate = gate + bg[deprel_edge]
        pot = val * jax.nn.sigmoid(gate)
        return neighbor.at[tgt].add(pot * m)

    neighbor = contrib(neighbor, ALIGN_IDX, params["V_in"], params["V_in_gate"],
                       params["b_in"], params["b_in_gate"])
    neighbor = contrib(neighbor, OPPOSITE_IDX, params["V_out"], params["V_out_gate"],
                       params["b_out"], params["b_out_gate"])
    neighbor = contrib(neighbor, SELF_IDX, params["W_self_loop"], params["W_self_loop_gate"])
    neighbor = contrib(neighbor, NOREL_IDX, params["W_no_relation"], params["W_no_relation_gate"])

    out = neighbor + inp
    return jnp.maximum(out, 0.0)   # activation = ReLU, dropout = identity (eval)


# ----------------------------------------------------------------------------
# Deterministic parameter init (mirrors module __init__ / init_params shapes)
# ----------------------------------------------------------------------------
def init_params(key, model_dim, deprel_size):
    gain = jnp.sqrt(2.0)  # calculate_gain('relu')

    def xavier_uniform(k, shape):
        fan_in, fan_out = shape[0], shape[1]
        a = gain * jnp.sqrt(6.0 / (fan_in + fan_out))
        return jax.random.uniform(k, shape, jnp.float32, -a, a)

    ks = jax.random.split(key, 8)
    return {
        "V_in": xavier_uniform(ks[0], (model_dim, model_dim)),
        "b_in": jnp.zeros((deprel_size, model_dim), jnp.float32),
        "V_in_gate": xavier_uniform(ks[1], (model_dim, 1)),
        "b_in_gate": jnp.ones((deprel_size, 1), jnp.float32),
        "V_out": xavier_uniform(ks[2], (model_dim, model_dim)),
        "b_out": jnp.zeros((deprel_size, model_dim), jnp.float32),
        "V_out_gate": xavier_uniform(ks[3], (model_dim, 1)),
        "b_out_gate": jnp.ones((deprel_size, 1), jnp.float32),
        "W_self_loop": xavier_uniform(ks[4], (model_dim, model_dim)),
        "W_self_loop_gate": xavier_uniform(ks[5], (model_dim, 1)),
        "W_no_relation": xavier_uniform(ks[6], (model_dim, model_dim)),
        "W_no_relation_gate": xavier_uniform(ks[7], (model_dim, 1)),
    }


if __name__ == "__main__":
    N = 24           # num_nodes
    D = 32           # model_dim
    DEPREL_SIZE = 8

    key = jax.random.PRNGKey(0)
    k_inp, k_par, k_rel, k_e1, k_e2, k_e3 = jax.random.split(key, 6)

    params = init_params(k_par, D, DEPREL_SIZE)
    inp = jax.random.normal(k_inp, (N, D), jnp.float32)

    # edges: self edges for every node + random align / opposite / norelation edges
    idx = jnp.arange(N, dtype=jnp.int32)
    n_align, n_opp, n_norel = 64, 64, 20
    a_src = jax.random.randint(k_e1, (n_align,), 0, N, jnp.int32)
    a_tgt = jax.random.randint(jax.random.fold_in(k_e1, 1), (n_align,), 0, N, jnp.int32)
    o_src = jax.random.randint(k_e2, (n_opp,), 0, N, jnp.int32)
    o_tgt = jax.random.randint(jax.random.fold_in(k_e2, 1), (n_opp,), 0, N, jnp.int32)
    r_src = jax.random.randint(k_e3, (n_norel,), 0, N, jnp.int32)
    r_tgt = jax.random.randint(jax.random.fold_in(k_e3, 1), (n_norel,), 0, N, jnp.int32)

    src = jnp.concatenate([idx, a_src, o_src, r_src])
    tgt = jnp.concatenate([idx, a_tgt, o_tgt, r_tgt])
    edge_index = jnp.stack([src, tgt], axis=0)          # [2, 172] -> 2 edge tiles of 128

    deparc_edge = jnp.concatenate([
        jnp.full((N,), SELF_IDX, jnp.int32),
        jnp.full((n_align,), ALIGN_IDX, jnp.int32),
        jnp.full((n_opp,), OPPOSITE_IDX, jnp.int32),
        jnp.full((n_norel,), NOREL_IDX, jnp.int32),
    ])
    deprel_edge = jax.random.randint(k_rel, (edge_index.shape[1],), 0, DEPREL_SIZE, jnp.int32)

    # edge_tile=128 here to exercise the multi-tile accumulation path (172 -> 2 tiles);
    # production default is 256 to fill the 256-wide MXU on v6e/v7x.
    out = syntactic_gcn_forward(inp, deprel_edge, deparc_edge, edge_index, params,
                                edge_tile=128)
    out = jax.block_until_ready(out)

    ref = reference_forward(inp, deprel_edge, deparc_edge, edge_index, params)
    ref = jax.block_until_ready(ref)

    assert out.shape == (N, D)
    # Kernel runs its E-scaled matmuls on the bf16 MXU path (f32 accumulation); the
    # node transforms / per-edge potentials carry bf16 rounding, so compare against
    # the f32 reference at bf16-level tolerance.
    assert jnp.allclose(out, ref, rtol=2e-2, atol=1e-1), \
        f"max abs diff {jnp.max(jnp.abs(out - ref))}"

    print("KERNEL_OK")
</pallas_src>

<mosaic_0001>
module attributes {stable_mosaic.version = 11 : i64} {
  func.func @_syngcn_kernel(%arg0: i32, %arg1: memref<32x128xf32, #tpu.memory_space<vmem>>, %arg2: memref<4x128x128xf32, #tpu.memory_space<vmem>>, %arg3: memref<16x128xf32, #tpu.memory_space<vmem>>, %arg4: memref<128x1xi32, #tpu.memory_space<vmem>>, %arg5: memref<128x1xi32, #tpu.memory_space<vmem>>, %arg6: memref<1x128xi32, #tpu.memory_space<vmem>>, %arg7: memref<32x128xf32, #tpu.memory_space<vmem>>, %arg8: memref<144x128xbf16, #tpu.memory_space<vmem>>) attributes {dimension_semantics = [#tpu.dimension_semantics<arbitrary>], iteration_bounds = array<i64: 2>, scalar_prefetch = 0 : i64, scratch_operands = 1 : i64, tpu.core_type = #tpu.core_type<tc>, window_params = [{pipeline_mode = #tpu.pipeline_mode<synchronous>, transform_indices = @transform_0, window_bounds = array<i64: 32, 128>}, {pipeline_mode = #tpu.pipeline_mode<synchronous>, transform_indices = @transform_1, window_bounds = array<i64: 4, 128, 128>}, {pipeline_mode = #tpu.pipeline_mode<synchronous>, transform_indices = @transform_2, window_bounds = array<i64: 16, 128>}, {transform_indices = @transform_3, window_bounds = array<i64: 128, 1>}, {transform_indices = @transform_4, window_bounds = array<i64: 128, 1>}, {transform_indices = @transform_5, window_bounds = array<i64: 1, 128>}, {pipeline_mode = #tpu.pipeline_mode<synchronous>, transform_indices = @transform_6, window_bounds = array<i64: 32, 128>}]} {
    %c0_i32 = arith.constant 0 : i32
    %0 = arith.cmpi eq, %arg0, %c0_i32 : i32
    %1 = arith.extui %0 : i1 to i32
    %c0_i32_0 = arith.constant 0 : i32
    %2 = arith.cmpi ne, %1, %c0_i32_0 : i32
    scf.if %2 {
      %c0_15 = arith.constant 0 : index
      %c0_16 = arith.constant 0 : index
      %39 = vector.load %arg1[%c0_15, %c0_16] : memref<32x128xf32, #tpu.memory_space<vmem>>, vector<32x128xf32>
      %c0_17 = arith.constant 0 : index
      %c0_18 = arith.constant 0 : index
      %c0_19 = arith.constant 0 : index
      %40 = vector.load %arg2[%c0_17, %c0_18, %c0_19] : memref<4x128x128xf32, #tpu.memory_space<vmem>>, vector<1x128x128xf32>
      %41 = vector.shape_cast %40 : vector<1x128x128xf32> to vector<128x128xf32>
      %cst_20 = arith.constant dense<0.000000e+00> : vector<32x128xf32>
      %42 = tpu.matmul %39, %41, %cst_20 {dimension_numbers = #tpu.dot_dimension_numbers<[1], [0], [0], [1], [0, 0, 1, 1], [], []>} : vector<32x128xf32>, vector<128x128xf32>, vector<32x128xf32> -> vector<32x128xf32>
      %43 = arith.truncf %42 : vector<32x128xf32> to vector<32x128xbf16>
      %c0_21 = arith.constant 0 : index
      %c0_22 = arith.constant 0 : index
      %44 = vector.load %arg8[%c0_21, %c0_22] : memref<144x128xbf16, #tpu.memory_space<vmem>>, vector<32x128xbf16>
      tpu.vector_store %arg8[%c0_21, %c0_22], %43 {strides = array<i32>} : memref<144x128xbf16, #tpu.memory_space<vmem>>, vector<32x128xbf16>,
      %c1 = arith.constant 1 : index
      %c0_23 = arith.constant 0 : index
      %c0_24 = arith.constant 0 : index
      %45 = vector.load %arg2[%c1, %c0_23, %c0_24] : memref<4x128x128xf32, #tpu.memory_space<vmem>>, vector<1x128x128xf32>
      %46 = vector.shape_cast %45 : vector<1x128x128xf32> to vector<128x128xf32>
      %cst_25 = arith.constant dense<0.000000e+00> : vector<32x128xf32>
      %47 = tpu.matmul %39, %46, %cst_25 {dimension_numbers = #tpu.dot_dimension_numbers<[1], [0], [0], [1], [0, 0, 1, 1], [], []>} : vector<32x128xf32>, vector<128x128xf32>, vector<32x128xf32> -> vector<32x128xf32>
      %48 = arith.truncf %47 : vector<32x128xf32> to vector<32x128xbf16>
      %c32 = arith.constant 32 : index
      %c0_26 = arith.constant 0 : index
      %49 = vector.load %arg8[%c32, %c0_26] : memref<144x128xbf16, #tpu.memory_space<vmem>>, vector<32x128xbf16>
      tpu.vector_store %arg8[%c32, %c0_26], %48 {strides = array<i32>} : memref<144x128xbf16, #tpu.memory_space<vmem>>, vector<32x128xbf16>,
      %c2 = arith.constant 2 : index
      %c0_27 = arith.constant 0 : index
      %c0_28 = arith.constant 0 : index
      %50 = vector.load %arg2[%c2, %c0_27, %c0_28] : memref<4x128x128xf32, #tpu.memory_space<vmem>>, vector<1x128x128xf32>
      %51 = vector.shape_cast %50 : vector<1x128x128xf32> to vector<128x128xf32>
      %cst_29 = arith.constant dense<0.000000e+00> : vector<32x128xf32>
      %52 = tpu.matmul %39, %51, %cst_29 {dimension_numbers = #tpu.dot_dimension_numbers<[1], [0], [0], [1], [0, 0, 1, 1], [], []>} : vector<32x128xf32>, vector<128x128xf32>, vector<32x128xf32> -> vector<32x128xf32>
      %53 = arith.truncf %52 : vector<32x128xf32> to vector<32x128xbf16>
      %c64 = arith.constant 64 : index
      %c0_30 = arith.constant 0 : index
      %54 = vector.load %arg8[%c64, %c0_30] : memref<144x128xbf16, #tpu.memory_space<vmem>>, vector<32x128xbf16>
      tpu.vector_store %arg8[%c64, %c0_30], %53 {strides = array<i32>} : memref<144x128xbf16, #tpu.memory_space<vmem>>, vector<32x128xbf16>,
      %c3 = arith.constant 3 : index
      %c0_31 = arith.constant 0 : index
      %c0_32 = arith.constant 0 : index
      %55 = vector.load %arg2[%c3, %c0_31, %c0_32] : memref<4x128x128xf32, #tpu.memory_space<vmem>>, vector<1x128x128xf32>
      %56 = vector.shape_cast %55 : vector<1x128x128xf32> to vector<128x128xf32>
      %cst_33 = arith.constant dense<0.000000e+00> : vector<32x128xf32>
      %57 = tpu.matmul %39, %56, %cst_33 {dimension_numbers = #tpu.dot_dimension_numbers<[1], [0], [0], [1], [0, 0, 1, 1], [], []>} : vector<32x128xf32>, vector<128x128xf32>, vector<32x128xf32> -> vector<32x128xf32>
      %58 = arith.truncf %57 : vector<32x128xf32> to vector<32x128xbf16>
      %c96 = arith.constant 96 : index
      %c0_34 = arith.constant 0 : index
      %59 = vector.load %arg8[%c96, %c0_34] : memref<144x128xbf16, #tpu.memory_space<vmem>>, vector<32x128xbf16>
      tpu.vector_store %arg8[%c96, %c0_34], %58 {strides = array<i32>} : memref<144x128xbf16, #tpu.memory_space<vmem>>, vector<32x128xbf16>,
      %c0_35 = arith.constant 0 : index
      %c0_36 = arith.constant 0 : index
      %60 = vector.load %arg3[%c0_35, %c0_36] : memref<16x128xf32, #tpu.memory_space<vmem>>, vector<16x128xf32>
      %61 = arith.truncf %60 : vector<16x128xf32> to vector<16x128xbf16>
      %c128 = arith.constant 128 : index
      %c0_37 = arith.constant 0 : index
      %62 = vector.load %arg8[%c128, %c0_37] : memref<144x128xbf16, #tpu.memory_space<vmem>>, vector<16x128xbf16>
      tpu.vector_store %arg8[%c128, %c0_37], %61 {strides = array<i32>} : memref<144x128xbf16, #tpu.memory_space<vmem>>, vector<16x128xbf16>,
      %cst_38 = arith.constant 0.000000e+00 : f32
      %63 = vector.broadcast %cst_38 : f32 to vector<32x128xf32>
      %c0_39 = arith.constant 0 : index
      %c0_40 = arith.constant 0 : index
      %64 = vector.load %arg7[%c0_39, %c0_40] : memref<32x128xf32, #tpu.memory_space<vmem>>, vector<32x128xf32>
      tpu.vector_store %arg7[%c0_39, %c0_40], %63 {strides = array<i32>} : memref<32x128xf32, #tpu.memory_space<vmem>>, vector<32x128xf32>,
    } else {
    }
    %3 = tpu.iota {dimensions = array<i32: 1>} : vector<128x144xi32>
    %c0 = arith.constant 0 : index
    %c0_1 = arith.constant 0 : index
    %4 = vector.load %arg4[%c0, %c0_1] : memref<128x1xi32, #tpu.memory_space<vmem>>, vector<128x1xi32>
    %5 = vector.broadcast %4 : vector<128x1xi32> to vector<128x144xi32>
    %6 = arith.cmpi eq, %3, %5 : vector<128x144xi32>
    %c0_2 = arith.constant 0 : index
    %c0_3 = arith.constant 0 : index
    %7 = vector.load %arg5[%c0_2, %c0_3] : memref<128x1xi32, #tpu.memory_space<vmem>>, vector<128x1xi32>
    %8 = vector.broadcast %7 : vector<128x1xi32> to vector<128x144xi32>
    %9 = arith.cmpi eq, %3, %8 : vector<128x144xi32>
    %10 = arith.ori %6, %9 : vector<128x144xi1>
    %11 = arith.extui %10 : vector<128x144xi1> to vector<128x144xi32>
    %12 = arith.sitofp %11 : vector<128x144xi32> to vector<128x144xf32>
    %13 = arith.truncf %12 : vector<128x144xf32> to vector<128x144xbf16>
    %c0_4 = arith.constant 0 : index
    %c0_5 = arith.constant 0 : index
    %14 = vector.load %arg8[%c0_4, %c0_5] : memref<144x128xbf16, #tpu.memory_space<vmem>>, vector<144x128xbf16>
    %cst = arith.constant dense<0.000000e+00> : vector<128x128xf32>
    %15 = tpu.matmul %13, %14, %cst {dimension_numbers = #tpu.dot_dimension_numbers<[1], [0], [0], [1], [0, 0, 1, 1], [], []>} : vector<128x144xbf16>, vector<144x128xbf16>, vector<128x128xf32> -> vector<128x128xf32>
    %16 = vector.extract_strided_slice %15 {offsets = [0, 32], sizes = [128, 1], strides = [1, 1]} : vector<128x128xf32> to vector<128x1xf32>
    %17 = arith.negf %16 : vector<128x1xf32>
    %18 = math.exp %17 : vector<128x1xf32>
    %cst_6 = arith.constant 1.000000e+00 : f32
    %19 = vector.broadcast %cst_6 : f32 to vector<128x1xf32>
    %20 = arith.addf %19, %18 : vector<128x1xf32>
    %21 = arith.divf %19, %20 : vector<128x1xf32>
    %22 = vector.broadcast %21 : vector<128x1xf32> to vector<128x128xf32>
    %23 = arith.mulf %15, %22 : vector<128x128xf32>
    %24 = arith.truncf %23 : vector<128x128xf32> to vector<128x128xbf16>
    %25 = tpu.iota {dimensions = array<i32: 0>} : vector<32x128xi32>
    %c0_7 = arith.constant 0 : index
    %c0_8 = arith.constant 0 : index
    %26 = vector.load %arg6[%c0_7, %c0_8] : memref<1x128xi32, #tpu.memory_space<vmem>>, vector<1x128xi32>
    %27 = vector.broadcast %26 : vector<1x128xi32> to vector<32x128xi32>
    %28 = arith.cmpi eq, %25, %27 : vector<32x128xi32>
    %29 = arith.extui %28 : vector<32x128xi1> to vector<32x128xi32>
    %30 = arith.sitofp %29 : vector<32x128xi32> to vector<32x128xf32>
    %31 = arith.truncf %30 : vector<32x128xf32> to vector<32x128xbf16>
    %c0_9 = arith.constant 0 : index
    %c0_10 = arith.constant 0 : index
    %32 = vector.load %arg7[%c0_9, %c0_10] : memref<32x128xf32, #tpu.memory_space<vmem>>, vector<32x128xf32>
    %cst_11 = arith.constant dense<0.000000e+00> : vector<32x128xf32>
    %33 = tpu.matmul %31, %24, %cst_11 {dimension_numbers = #tpu.dot_dimension_numbers<[1], [0], [0], [1], [0, 0, 1, 1], [], []>} : vector<32x128xbf16>, vector<128x128xbf16>, vector<32x128xf32> -> vector<32x128xf32>
    %34 = arith.addf %32, %33 : vector<32x128xf32>
    %c0_12 = arith.constant 0 : index
    %c0_13 = arith.constant 0 : index
    %35 = vector.load %arg7[%c0_12, %c0_13] : memref<32x128xf32, #tpu.memory_space<vmem>>, vector<32x128xf32>
    tpu.vector_store %arg7[%c0_12, %c0_13], %34 {strides = array<i32>} : memref<32x128xf32, #tpu.memory_space<vmem>>, vector<32x128xf32>,
    %c1_i32 = arith.constant 1 : i32
    %36 = arith.cmpi eq, %arg0, %c1_i32 : i32
    %37 = arith.extui %36 : i1 to i32
    %c0_i32_14 = arith.constant 0 : i32
    %38 = arith.cmpi ne, %37, %c0_i32_14 : i32
    scf.if %38 {
      %c0_15 = arith.constant 0 : index
      %c0_16 = arith.constant 0 : index
      %39 = vector.load %arg7[%c0_15, %c0_16] : memref<32x128xf32, #tpu.memory_space<vmem>>, vector<32x128xf32>
      %c0_17 = arith.constant 0 : index
      %c0_18 = arith.constant 0 : index
      %40 = vector.load %arg1[%c0_17, %c0_18] : memref<32x128xf32, #tpu.memory_space<vmem>>, vector<32x128xf32>
      %41 = arith.addf %39, %40 : vector<32x128xf32>
      %cst_19 = arith.constant 0.000000e+00 : f32
      %42 = vector.broadcast %cst_19 : f32 to vector<32x128xf32>
      %43 = arith.maximumf %41, %42 : vector<32x128xf32>
      %c0_20 = arith.constant 0 : index
      %c0_21 = arith.constant 0 : index
      %44 = vector.load %arg7[%c0_20, %c0_21] : memref<32x128xf32, #tpu.memory_space<vmem>>, vector<32x128xf32>
      tpu.vector_store %arg7[%c0_20, %c0_21], %43 {strides = array<i32>} : memref<32x128xf32, #tpu.memory_space<vmem>>, vector<32x128xf32>,
    } else {
    }
    return
  }
  func.func @transform_0(%arg0: i32) -> (i32, i32) {
    %c0_i32 = arith.constant 0 : i32
    %c0_i32_0 = arith.constant 0 : i32
    %c0_i32_1 = arith.constant 0 : i32
    return %c0_i32, %c0_i32_0 : i32, i32
  }
  func.func @transform_1(%arg0: i32) -> (i32, i32, i32) {
    %c0_i32 = arith.constant 0 : i32
    %c0_i32_0 = arith.constant 0 : i32
    %c0_i32_1 = arith.constant 0 : i32
    %c0_i32_2 = arith.constant 0 : i32
    return %c0_i32, %c0_i32_0, %c0_i32_1 : i32, i32, i32
  }
  func.func @transform_2(%arg0: i32) -> (i32, i32) {
    %c0_i32 = arith.constant 0 : i32
    %c0_i32_0 = arith.constant 0 : i32
    %c0_i32_1 = arith.constant 0 : i32
    return %c0_i32, %c0_i32_0 : i32, i32
  }
  func.func @transform_3(%arg0: i32) -> (i32, i32) {
    %c0_i32 = arith.constant 0 : i32
    %c0_i32_0 = arith.constant 0 : i32
    return %arg0, %c0_i32 : i32, i32
  }
  func.func @transform_4(%arg0: i32) -> (i32, i32) {
    %c0_i32 = arith.constant 0 : i32
    %c0_i32_0 = arith.constant 0 : i32
    return %arg0, %c0_i32 : i32, i32
  }
  func.func @transform_5(%arg0: i32) -> (i32, i32) {
    %c0_i32 = arith.constant 0 : i32
    %c0_i32_0 = arith.constant 0 : i32
    return %c0_i32, %arg0 : i32, i32
  }
  func.func @transform_6(%arg0: i32) -> (i32, i32) {
    %c0_i32 = arith.constant 0 : i32
    %c0_i32_0 = arith.constant 0 : i32
    %c0_i32_1 = arith.constant 0 : i32
    return %c0_i32, %c0_i32_0 : i32, i32
  }
}

</mosaic_0001>

<llo_original>
// kernel: syntactic_gcn_forward.1
$region0: #{syntactic_gcn_forward.1}
  #allocation0 [shape = 'u32[]', space=smem, size = 0x4, offset = 0x4, fixed_abs, tag = 'smem constant byte address 0x4 - core index']
  #allocation1 [shape = 'u32[72,128]{1,0:T(1,128)}', space=vmem, size = 0x9000, scoped, tag = 'internal scratch']
  #allocation2 [shape = 'bf16[144,128]{1,0:T(8,128)(2,1)}', space=vmem, size = 0x9000, scoped, tag = 'scratch operand']
  %s0 = inlined_call_operand.vmem [shape: f32[32,128], index: 0, kind: input, shape index: {}]
  %s1 = inlined_call_operand.vmem [shape: f32[4,128,128], index: 1, kind: input, shape index: {}]
  %s2 = inlined_call_operand.vmem [shape: f32[16,128], index: 2, kind: input, shape index: {}]
  %s3 = inlined_call_operand.vmem [shape: s32[256,1], index: 3, kind: input, shape index: {}]
  %s4 = inlined_call_operand.vmem [shape: s32[256,1], index: 4, kind: input, shape index: {}]
  %s5 = inlined_call_operand.vmem [shape: s32[1,256], index: 5, kind: input, shape index: {}]
  %s6 = inlined_call_operand.vmem [shape: f32[32,128], index: 6, kind: output, shape index: {}]
  %s7 = sld [smem:[#allocation0]]
  $region65: #{syntactic_gcn_forward.1} parent=0
    _
  %s9 = ssub.s32 1, %s7
  %s10 = scalar_select 0, %s9, %s7
  loop: start=0, step=1, limit=4
  $region2: #{syntactic_gcn_forward.1} parent=0 // loop_pre_header
    _
  $region3: #{syntactic_gcn_forward.1} parent=0 // loop_header
    %s12 = sphi 0, %s16
    %p13 = scmp.ge.s32.totalorder %s12, 4
    %s20 = sphi 0, %s20
    %s22 = sphi 0, %s20
    %s23 = sphi 0, %s22
    %s37 = sphi 0, %s23
    %s41 = sphi 0, %s41
    %s43 = sphi 0, %s41
    %s44 = sphi 0, %s43
    %s58 = sphi 0, %s44
    %s62 = sphi 0, %s62
    %s64 = sphi 0, %s62
    %s65 = sphi 0, %s64
    %s79 = sphi 0, %s65
    %s85 = sphi 0, %s87
    %s88 = sphi 0, %s85
    %s89 = sphi 0, %s88
    %s105 = sphi 0, %s89
    %s111 = sphi 0, %s113
    %s114 = sphi 0, %s111
    %s115 = sphi 0, %s114
    %s131 = sphi 0, %s115
    %s137 = sphi 0, %s139
    %s140 = sphi 0, %s137
    %s141 = sphi 0, %s140
    %s157 = sphi 0, %s141
    %s161 = sphi 0, %s161
    %s163 = sphi 0, %s161
    %s164 = sphi 0, %s163
    %s178 = sphi 0, %s164
  $region4: #{syntactic_gcn_forward.1} parent=0 // loop_header_branch
    %15 = sbr.rel (%p13) target = $region8
  $region5: #{syntactic_gcn_forward.1} parent=0 // loop_body
    %s17 = ssub.s32 %s12, 1
    %s18 = ssub.s32 %s12, 2
    %s19 = sadd.s32 %s12, 1
    %s21 = sadd.s32 %s20, 1
    %p24 = scmp.eq.s32.totalorder %s12, 1
    %p25 = scmp.ne.s32.totalorder %s20, %s22
    %p26 = scmp.eq.s32.totalorder %s12, 0
    %p27 = por %p25, %p26
    %p28 = scmp.ne.s32.totalorder %s20, %s22
    %p29 = scmp.eq.s32.totalorder %s17, 1
    %p30 = por %p28, %p29
    %p31 = scmp.ne.s32.totalorder %s22, %s23
    %p32 = scmp.eq.s32.totalorder %s17, 0
    %p33 = por %p31, %p32
    %p34 = scmp.ne.s32.totalorder %s22, %s23
    %p35 = scmp.eq.s32.totalorder %s18, 1
    %p36 = por %p34, %p35
    %p38 = scmp.ne.s32.totalorder %s23, %s37
    %p39 = scmp.eq.s32.totalorder %s18, 0
    %p40 = por %p38, %p39
    %s42 = sadd.s32 %s41, 1
    %p45 = scmp.eq.s32.totalorder %s12, 1
    %p46 = scmp.ne.s32.totalorder %s41, %s43
    %p47 = scmp.eq.s32.totalorder %s12, 0
    %p48 = por %p46, %p47
    %p49 = scmp.ne.s32.totalorder %s41, %s43
    %p50 = scmp.eq.s32.totalorder %s17, 1
    %p51 = por %p49, %p50
    %p52 = scmp.ne.s32.totalorder %s43, %s44
    %p53 = scmp.eq.s32.totalorder %s17, 0
    %p54 = por %p52, %p53
    %p55 = scmp.ne.s32.totalorder %s43, %s44
    %p56 = scmp.eq.s32.totalorder %s18, 1
    %p57 = por %p55, %p56
    %p59 = scmp.ne.s32.totalorder %s44, %s58
    %p60 = scmp.eq.s32.totalorder %s18, 0
    %p61 = por %p59, %p60
    %s63 = sadd.s32 %s62, 1
    %p66 = scmp.eq.s32.totalorder %s12, 1
    %p67 = scmp.ne.s32.totalorder %s62, %s64
    %p68 = scmp.eq.s32.totalorder %s12, 0
    %p69 = por %p67, %p68
    %p70 = scmp.ne.s32.totalorder %s62, %s64
    %p71 = scmp.eq.s32.totalorder %s17, 1
    %p72 = por %p70, %p71
    %p73 = scmp.ne.s32.totalorder %s64, %s65
    %p74 = scmp.eq.s32.totalorder %s17, 0
    %p75 = por %p73, %p74
    %p76 = scmp.ne.s32.totalorder %s64, %s65
    %p77 = scmp.eq.s32.totalorder %s18, 1
    %p78 = por %p76, %p77
    %p80 = scmp.ne.s32.totalorder %s65, %s79
    %p81 = scmp.eq.s32.totalorder %s18, 0
    %p82 = por %p80, %p81
    %s83 = ssub.s32 %s12, %s19
    %p84 = scmp.eq.s32.totalorder %s83, 0
    %s86 = sadd.s32 %s85, 1
    %s87 = scalar_select %p84, %s85, %s86
    %p90 = pneg %p84
    %p91 = scmp.eq.s32.totalorder %s12, 1
    %p92 = por %p90, %p91
    %p93 = scmp.ne.s32.totalorder %s85, %s88
    %p94 = scmp.eq.s32.totalorder %s12, 0
    %p95 = por %p93, %p94
    %p96 = scmp.ne.s32.totalorder %s85, %s88
    %p97 = scmp.eq.s32.totalorder %s17, 1
    %p98 = por %p96, %p97
    %p99 = scmp.ne.s32.totalorder %s88, %s89
    %p100 = scmp.eq.s32.totalorder %s17, 0
    %p101 = por %p99, %p100
    %p102 = scmp.ne.s32.totalorder %s88, %s89
    %p103 = scmp.eq.s32.totalorder %s18, 1
    %p104 = por %p102, %p103
    %p106 = scmp.ne.s32.totalorder %s89, %s105
    %p107 = scmp.eq.s32.totalorder %s18, 0
    %p108 = por %p106, %p107
    %s109 = ssub.s32 %s12, %s19
    %p110 = scmp.eq.s32.totalorder %s109, 0
    %s112 = sadd.s32 %s111, 1
    %s113 = scalar_select %p110, %s111, %s112
    %p116 = pneg %p110
    %p117 = scmp.eq.s32.totalorder %s12, 1
    %p118 = por %p116, %p117
    %p119 = scmp.ne.s32.totalorder %s111, %s114
    %p120 = scmp.eq.s32.totalorder %s12, 0
    %p121 = por %p119, %p120
    %p122 = scmp.ne.s32.totalorder %s111, %s114
    %p123 = scmp.eq.s32.totalorder %s17, 1
    %p124 = por %p122, %p123
    %p125 = scmp.ne.s32.totalorder %s114, %s115
    %p126 = scmp.eq.s32.totalorder %s17, 0
    %p127 = por %p125, %p126
    %p128 = scmp.ne.s32.totalorder %s114, %s115
    %p129 = scmp.eq.s32.totalorder %s18, 1
    %p130 = por %p128, %p129
    %p132 = scmp.ne.s32.totalorder %s115, %s131
    %p133 = scmp.eq.s32.totalorder %s18, 0
    %p134 = por %p132, %p133
    %s135 = ssub.s32 %s12, %s19
    %p136 = scmp.eq.s32.totalorder %s135, 0
    %s138 = sadd.s32 %s137, 1
    %s139 = scalar_select %p136, %s137, %s138
    %p142 = pneg %p136
    %p143 = scmp.eq.s32.totalorder %s12, 1
    %p144 = por %p142, %p143
    %p145 = scmp.ne.s32.totalorder %s137, %s140
    %p146 = scmp.eq.s32.totalorder %s12, 0
    %p147 = por %p145, %p146
    %p148 = scmp.ne.s32.totalorder %s137, %s140
    %p149 = scmp.eq.s32.totalorder %s17, 1
    %p150 = por %p148, %p149
    %p151 = scmp.ne.s32.totalorder %s140, %s141
    %p152 = scmp.eq.s32.totalorder %s17, 0
    %p153 = por %p151, %p152
    %p154 = scmp.ne.s32.totalorder %s140, %s141
    %p155 = scmp.eq.s32.totalorder %s18, 1
    %p156 = por %p154, %p155
    %p158 = scmp.ne.s32.totalorder %s141, %s157
    %p159 = scmp.eq.s32.totalorder %s18, 0
    %p160 = por %p158, %p159
    %s162 = sadd.s32 %s161, 1
    %p165 = scmp.eq.s32.totalorder %s12, 1
    %p166 = scmp.ne.s32.totalorder %s161, %s163
    %p167 = scmp.eq.s32.totalorder %s12, 0
    %p168 = por %p166, %p167
    %p169 = scmp.ne.s32.totalorder %s161, %s163
    %p170 = scmp.eq.s32.totalorder %s17, 1
    %p171 = por %p169, %p170
    %p172 = scmp.ne.s32.totalorder %s163, %s164
    %p173 = scmp.eq.s32.totalorder %s17, 0
    %p174 = por %p172, %p173
    %p175 = scmp.ne.s32.totalorder %s163, %s164
    %p176 = scmp.eq.s32.totalorder %s18, 1
    %p177 = por %p175, %p176
    %p179 = scmp.ne.s32.totalorder %s164, %s178
    %p180 = scmp.eq.s32.totalorder %s18, 0
    %p181 = por %p179, %p180
    %p182 = scmp.le.s32.totalorder 1, %s12
    %p183 = scmp.lt.s32.totalorder %s12, 3
    %p184 = pnand %p182, %p183
    %p185 = pneg %p184
    // Predicated region
    $region9: #{syntactic_gcn_forward.1} parent=5 // pred_check
      _
    $region10: #{syntactic_gcn_forward.1} parent=5 // pred_check_branch
      %187 = sbr.rel (%p184) target = $region12
    $region11: #{syntactic_gcn_forward.1} parent=5 // pred_region
      %s188 = ssub.s32 %s12, 1
      // Predicated region
      $region13: #{syntactic_gcn_forward.1} parent=11 // pred_check
        %p189 = pneg %p33
      $region14: #{syntactic_gcn_forward.1} parent=11 // pred_check_branch
        %191 = sbr.rel (%p189) target = $region16
      $region15: #{syntactic_gcn_forward.1} parent=11 // pred_region
        _
      $region16: #{syntactic_gcn_forward.1} parent=11 // pred_fallthru
        _
      // Predicated region
      $region17: #{syntactic_gcn_forward.1} parent=11 // pred_check
        %p192 = pneg %p54
      $region18: #{syntactic_gcn_forward.1} parent=11 // pred_check_branch
        %194 = sbr.rel (%p192) target = $region20
      $region19: #{syntactic_gcn_forward.1} parent=11 // pred_region
        _
      $region20: #{syntactic_gcn_forward.1} parent=11 // pred_fallthru
        _
      // Predicated region
      $region21: #{syntactic_gcn_forward.1} parent=11 // pred_check
        %p195 = pneg %p75
      $region22: #{syntactic_gcn_forward.1} parent=11 // pred_check_branch
        %197 = sbr.rel (%p195) target = $region24
      $region23: #{syntactic_gcn_forward.1} parent=11 // pred_region
        _
      $region24: #{syntactic_gcn_forward.1} parent=11 // pred_fallthru
        _
    $region12: #{syntactic_gcn_forward.1} parent=5 // pred_fallthru
      _
    %p198 = scmp.lt.s32.totalorder %s12, 2
    // Predicated region
    $region25: #{syntactic_gcn_forward.1} parent=5 // pred_check
      %p199 = pneg %p198
    $region26: #{syntactic_gcn_forward.1} parent=5 // pred_check_branch
      %201 = sbr.rel (%p199) target = $region28
    $region27: #{syntactic_gcn_forward.1} parent=5 // pred_region
      // Predicated region
      $region29: #{syntactic_gcn_forward.1} parent=27 // pred_check
        %p202 = pneg %p95
      $region30: #{syntactic_gcn_forward.1} parent=27 // pred_check_branch
        %204 = sbr.rel (%p202) target = $region32
      $region31: #{syntactic_gcn_forward.1} parent=27 // pred_region
        %s205 = smul.u32 16, %s12
        %p206 = scmp.lt.s32.totalorder %s205, 31
        %s207 = scalar_select %p206, %s205, 31
        %s208 = smul.addr %s207, 8
        %s209 = scalar_lea.vmem %s3, %s208
        %s210 = smul.u32 16, %s12
      $region32: #{syntactic_gcn_forward.1} parent=27 // pred_fallthru
        _
      // Predicated region
      $region33: #{syntactic_gcn_forward.1} parent=27 // pred_check
        %p211 = pneg %p121
      $region34: #{syntactic_gcn_forward.1} parent=27 // pred_check_branch
        %213 = sbr.rel (%p211) target = $region36
      $region35: #{syntactic_gcn_forward.1} parent=27 // pred_region
        %s214 = smul.u32 16, %s12
        %p215 = scmp.lt.s32.totalorder %s214, 31
        %s216 = scalar_select %p215, %s214, 31
        %s217 = smul.addr %s216, 8
        %s218 = scalar_lea.vmem %s4, %s217
        %s219 = smul.u32 16, %s12
      $region36: #{syntactic_gcn_forward.1} parent=27 // pred_fallthru
        _
      // Predicated region
      $region37: #{syntactic_gcn_forward.1} parent=27 // pred_check
        %p220 = pneg %p147
      $region38: #{syntactic_gcn_forward.1} parent=27 // pred_check_branch
        %222 = sbr.rel (%p220) target = $region40
      $region39: #{syntactic_gcn_forward.1} parent=27 // pred_region
        %p223 = scmp.lt.s32.totalorder %s12, 1
        %s224 = scalar_select %p223, %s12, 1
        %s225 = scalar_lea.vmem %s5, %s224
      $region40: #{syntactic_gcn_forward.1} parent=27 // pred_fallthru
        _
    $region28: #{syntactic_gcn_forward.1} parent=5 // pred_fallthru
      _
    %p226 = scmp.le.s32.totalorder 1, %s12
    %p227 = scmp.lt.s32.totalorder %s12, 3
    %p228 = pnand %p226, %p227
    %p229 = pneg %p228
    // Predicated region
    $region41: #{syntactic_gcn_forward.1} parent=5 // pred_check
      _
    $region42: #{syntactic_gcn_forward.1} parent=5 // pred_check_branch
      %231 = sbr.rel (%p228) target = $region44
    $region43: #{syntactic_gcn_forward.1} parent=5 // pred_region
      %s232 = ssub.s32 %s12, 1
      %p233 = pneg %p33
      %p234 = pneg %p30
      %p235 = pneg %p54
      %p236 = pneg %p51
      %p237 = pneg %p75
      %p238 = pneg %p72
      %s239 = smul.u32 16, %s17
      %p240 = scmp.lt.s32.totalorder %s239, 31
      %s241 = scalar_select %p240, %s239, 31
      %s242 = smul.addr %s241, 8
      %s243 = scalar_lea.vmem %s3, %s242
      %p244 = pneg %p101
      %p245 = pneg %p98
      %s246 = smul.u32 16, %s17
      %p247 = scmp.lt.s32.totalorder %s246, 31
      %s248 = scalar_select %p247, %s246, 31
      %s249 = smul.addr %s248, 8
      %s250 = scalar_lea.vmem %s4, %s249
      %p251 = pneg %p127
      %p252 = pneg %p124
      %p253 = scmp.lt.s32.totalorder %s17, 1
      %s254 = scalar_select %p253, %s17, 1
      %s255 = scalar_lea.vmem %s5, %s254
      %p256 = pneg %p153
      %p257 = pneg %p150
      %p258 = pneg %p174
      %p259 = pneg %p171
      %s260 = smul.u32 16, %s17
      %p261 = scmp.lt.s32.totalorder %s260, 31
      %s262 = scalar_select %p261, %s260, 31
      %s263 = smul.addr %s262, 8
      %s264 = scalar_lea.vmem %s3, %s263
      %s265 = smul.u32 16, %s17
      %s266 = smul.u32 16, %s17
      %p267 = scmp.lt.s32.totalorder %s266, 31
      %s268 = scalar_select %p267, %s266, 31
      %s269 = smul.addr %s268, 8
      %s270 = scalar_lea.vmem %s4, %s269
      %s271 = smul.u32 16, %s17
      %p272 = scmp.lt.s32.totalorder %s17, 1
      %s273 = scalar_select %p272, %s17, 1
      %s274 = scalar_lea.vmem %s5, %s273
      %p276 = scmp.eq.s32.totalorder %s17, 0
      // Predicated region
      $region45: #{syntactic_gcn_forward.1} parent=43 // pred_check
        %p277 = pneg %p276
      $region46: #{syntactic_gcn_forward.1} parent=43 // pred_check_branch
        %279 = sbr.rel (%p277) target = $region48
      $region47: #{syntactic_gcn_forward.1} parent=43 // pred_region
        %v280 = vld [vmem:[%s0] sm:$0xff]
        %v281 = vld [vmem:[%s0 + $0x8] sm:$0xff]
        %v282 = vld [vmem:[%s0 + $0x10] sm:$0xff]
        %v283 = vld [vmem:[%s0 + $0x18] sm:$0xff]
        %v284 = vld [vmem:[%s1] sm:$0xff]
        %v285 = vld [vmem:[%s1 + $0x8] sm:$0xff]
        %v286 = vld [vmem:[%s1 + $0x10] sm:$0xff]
        %v287 = vld [vmem:[%s1 + $0x18] sm:$0xff]
        %v288 = vld [vmem:[%s1 + $0x20] sm:$0xff]
        %v289 = vld [vmem:[%s1 + $0x28] sm:$0xff]
        %v290 = vld [vmem:[%s1 + $0x30] sm:$0xff]
        %v291 = vld [vmem:[%s1 + $0x38] sm:$0xff]
        %v292 = vld [vmem:[%s1 + $0x40] sm:$0xff]
        %v293 = vld [vmem:[%s1 + $0x48] sm:$0xff]
        %v294 = vld [vmem:[%s1 + $0x50] sm:$0xff]
        %v295 = vld [vmem:[%s1 + $0x58] sm:$0xff]
        %v296 = vld [vmem:[%s1 + $0x60] sm:$0xff]
        %v297 = vld [vmem:[%s1 + $0x68] sm:$0xff]
        %v298 = vld [vmem:[%s1 + $0x70] sm:$0xff]
        %v299 = vld [vmem:[%s1 + $0x78] sm:$0xff]
        %300 = vmatpush.msra.mxu0 %v299
        %301 = vmatpush.msra.mxu0 %v298
        %302 = vmatpush.msra.mxu0 %v297
        %303 = vmatpush.msra.mxu0 %v296
        %304 = vmatpush.msra.mxu0 %v295
        %305 = vmatpush.msra.mxu0 %v294
        %306 = vmatpush.msra.mxu0 %v293
        %307 = vmatpush.msra.mxu0 %v292
        %308 = vmatpush.msra.mxu0 %v291
        %309 = vmatpush.msra.mxu0 %v290
        %310 = vmatpush.msra.mxu0 %v289
        %311 = vmatpush.msra.mxu0 %v288
        %312 = vmatpush.msra.mxu0 %v287
        %313 = vmatpush.msra.mxu0 %v286
        %314 = vmatpush.msra.mxu0 %v285
        %315 = vmatpush.msra.mxu0 %v284
        %316 = vmatmul.f32.gmra.mxu0 %v280
        %v317 = vpop.f32.mrf.mxu0
        %v318 = vadd.f32 0.0, %v317
        %319 = vmatmul.f32.gmra.mxu0 %v281
        %v320 = vpop.f32.mrf.mxu0
        %v321 = vadd.f32 0.0, %v320
        %322 = vmatmul.f32.gmra.mxu0 %v282
        %v323 = vpop.f32.mrf.mxu0
        %v324 = vadd.f32 0.0, %v323
        %325 = vmatmul.f32.gmra.mxu0 %v283
        %v326 = vpop.f32.mrf.mxu0
        %v327 = vadd.f32 0.0, %v326
        %328 = vdwg.mxu0
        %v329 = vpack.c.bf16 %v318, %v318
        %v330 = vpack.c.bf16 %v321, %v321
        %v331 = vpack.c.bf16 %v324, %v324
        %v332 = vpack.c.bf16 %v327, %v327
        %333 = vst [vmem:[#allocation2] sm:$0xf] %v329
        %334 = vst [vmem:[#allocation2 + $0x4] sm:$0xf] %v330
        %335 = vst [vmem:[#allocation2 + $0x8] sm:$0xf] %v331
        %336 = vst [vmem:[#allocation2 + $0xc] sm:$0xf] %v332
        %s337 = scalar_lea.vmem %s1, 128
        %v338 = vld [vmem:[%s337] sm:$0xff]
        %v339 = vld [vmem:[%s337 + $0x8] sm:$0xff]
        %v340 = vld [vmem:[%s337 + $0x10] sm:$0xff]
        %v341 = vld [vmem:[%s337 + $0x18] sm:$0xff]
        %v342 = vld [vmem:[%s337 + $0x20] sm:$0xff]
        %v343 = vld [vmem:[%s337 + $0x28] sm:$0xff]
        %v344 = vld [vmem:[%s337 + $0x30] sm:$0xff]
        %v345 = vld [vmem:[%s337 + $0x38] sm:$0xff]
        %v346 = vld [vmem:[%s337 + $0x40] sm:$0xff]
        %v347 = vld [vmem:[%s337 + $0x48] sm:$0xff]
        %v348 = vld [vmem:[%s337 + $0x50] sm:$0xff]
        %v349 = vld [vmem:[%s337 + $0x58] sm:$0xff]
        %v350 = vld [vmem:[%s337 + $0x60] sm:$0xff]
        %v351 = vld [vmem:[%s337 + $0x68] sm:$0xff]
        %v352 = vld [vmem:[%s337 + $0x70] sm:$0xff]
        %v353 = vld [vmem:[%s337 + $0x78] sm:$0xff]
        %354 = vmatpush.msra.mxu0 %v353
        %355 = vmatpush.msra.mxu0 %v352
        %356 = vmatpush.msra.mxu0 %v351
        %357 = vmatpush.msra.mxu0 %v350
        %358 = vmatpush.msra.mxu0 %v349
        %359 = vmatpush.msra.mxu0 %v348
        %360 = vmatpush.msra.mxu0 %v347
        %361 = vmatpush.msra.mxu0 %v346
        %362 = vmatpush.msra.mxu0 %v345
        %363 = vmatpush.msra.mxu0 %v344
        %364 = vmatpush.msra.mxu0 %v343
        %365 = vmatpush.msra.mxu0 %v342
        %366 = vmatpush.msra.mxu0 %v341
        %367 = vmatpush.msra.mxu0 %v340
        %368 = vmatpush.msra.mxu0 %v339
        %369 = vmatpush.msra.mxu0 %v338
        %370 = vmatmul.f32.gmra.mxu0 %v280
        %v371 = vpop.f32.mrf.mxu0
        %v372 = vadd.f32 0.0, %v371
        %373 = vmatmul.f32.gmra.mxu0 %v281
        %v374 = vpop.f32.mrf.mxu0
        %v375 = vadd.f32 0.0, %v374
        %376 = vmatmul.f32.gmra.mxu0 %v282
        %v377 = vpop.f32.mrf.mxu0
        %v378 = vadd.f32 0.0, %v377
        %379 = vmatmul.f32.gmra.mxu0 %v283
        %v380 = vpop.f32.mrf.mxu0
        %v381 = vadd.f32 0.0, %v380
        %382 = vdwg.mxu0
        %v383 = vpack.c.bf16 %v372, %v372
        %v384 = vpack.c.bf16 %v375, %v375
        %v385 = vpack.c.bf16 %v378, %v378
        %v386 = vpack.c.bf16 %v381, %v381
        %387 = vst [vmem:[#allocation2 + $0x10] sm:$0xf] %v383
        %388 = vst [vmem:[#allocation2 + $0x14] sm:$0xf] %v384
        %389 = vst [vmem:[#allocation2 + $0x18] sm:$0xf] %v385
        %390 = vst [vmem:[#allocation2 + $0x1c] sm:$0xf] %v386
        %s391 = scalar_lea.vmem %s1, 256
        %v392 = vld [vmem:[%s391] sm:$0xff]
        %v393 = vld [vmem:[%s391 + $0x8] sm:$0xff]
        %v394 = vld [vmem:[%s391 + $0x10] sm:$0xff]
        %v395 = vld [vmem:[%s391 + $0x18] sm:$0xff]
        %v396 = vld [vmem:[%s391 + $0x20] sm:$0xff]
        %v397 = vld [vmem:[%s391 + $0x28] sm:$0xff]
        %v398 = vld [vmem:[%s391 + $0x30] sm:$0xff]
        %v399 = vld [vmem:[%s391 + $0x38] sm:$0xff]
        %v400 = vld [vmem:[%s391 + $0x40] sm:$0xff]
        %v401 = vld [vmem:[%s391 + $0x48] sm:$0xff]
        %v402 = vld [vmem:[%s391 + $0x50] sm:$0xff]
        %v403 = vld [vmem:[%s391 + $0x58] sm:$0xff]
        %v404 = vld [vmem:[%s391 + $0x60] sm:$0xff]
        %v405 = vld [vmem:[%s391 + $0x68] sm:$0xff]
        %v406 = vld [vmem:[%s391 + $0x70] sm:$0xff]
        %v407 = vld [vmem:[%s391 + $0x78] sm:$0xff]
        %408 = vmatpush.msra.mxu0 %v407
        %409 = vmatpush.msra.mxu0 %v406
        %410 = vmatpush.msra.mxu0 %v405
        %411 = vmatpush.msra.mxu0 %v404
        %412 = vmatpush.msra.mxu0 %v403
        %413 = vmatpush.msra.mxu0 %v402
        %414 = vmatpush.msra.mxu0 %v401
        %415 = vmatpush.msra.mxu0 %v400
        %416 = vmatpush.msra.mxu0 %v399
        %417 = vmatpush.msra.mxu0 %v398
        %418 = vmatpush.msra.mxu0 %v397
        %419 = vmatpush.msra.mxu0 %v396
        %420 = vmatpush.msra.mxu0 %v395
        %421 = vmatpush.msra.mxu0 %v394
        %422 = vmatpush.msra.mxu0 %v393
        %423 = vmatpush.msra.mxu0 %v392
        %424 = vmatmul.f32.gmra.mxu0 %v280
        %v425 = vpop.f32.mrf.mxu0
        %v426 = vadd.f32 0.0, %v425
        %427 = vmatmul.f32.gmra.mxu0 %v281
        %v428 = vpop.f32.mrf.mxu0
        %v429 = vadd.f32 0.0, %v428
        %430 = vmatmul.f32.gmra.mxu0 %v282
        %v431 = vpop.f32.mrf.mxu0
        %v432 = vadd.f32 0.0, %v431
        %433 = vmatmul.f32.gmra.mxu0 %v283
        %v434 = vpop.f32.mrf.mxu0
        %v435 = vadd.f32 0.0, %v434
        %436 = vdwg.mxu0
        %v437 = vpack.c.bf16 %v426, %v426
        %v438 = vpack.c.bf16 %v429, %v429
        %v439 = vpack.c.bf16 %v432, %v432
        %v440 = vpack.c.bf16 %v435, %v435
        %441 = vst [vmem:[#allocation2 + $0x20] sm:$0xf] %v437
        %442 = vst [vmem:[#allocation2 + $0x24] sm:$0xf] %v438
        %443 = vst [vmem:[#allocation2 + $0x28] sm:$0xf] %v439
        %444 = vst [vmem:[#allocation2 + $0x2c] sm:$0xf] %v440
        %s445 = scalar_lea.vmem %s1, 384
        %v446 = vld [vmem:[%s445] sm:$0xff]
        %v447 = vld [vmem:[%s445 + $0x8] sm:$0xff]
        %v448 = vld [vmem:[%s445 + $0x10] sm:$0xff]
        %v449 = vld [vmem:[%s445 + $0x18] sm:$0xff]
        %v450 = vld [vmem:[%s445 + $0x20] sm:$0xff]
        %v451 = vld [vmem:[%s445 + $0x28] sm:$0xff]
        %v452 = vld [vmem:[%s445 + $0x30] sm:$0xff]
        %v453 = vld [vmem:[%s445 + $0x38] sm:$0xff]
        %v454 = vld [vmem:[%s445 + $0x40] sm:$0xff]
        %v455 = vld [vmem:[%s445 + $0x48] sm:$0xff]
        %v456 = vld [vmem:[%s445 + $0x50] sm:$0xff]
        %v457 = vld [vmem:[%s445 + $0x58] sm:$0xff]
        %v458 = vld [vmem:[%s445 + $0x60] sm:$0xff]
        %v459 = vld [vmem:[%s445 + $0x68] sm:$0xff]
        %v460 = vld [vmem:[%s445 + $0x70] sm:$0xff]
        %v461 = vld [vmem:[%s445 + $0x78] sm:$0xff]
        %462 = vmatpush.msra.mxu0 %v461
        %463 = vmatpush.msra.mxu0 %v460
        %464 = vmatpush.msra.mxu0 %v459
        %465 = vmatpush.msra.mxu0 %v458
        %466 = vmatpush.msra.mxu0 %v457
        %467 = vmatpush.msra.mxu0 %v456
        %468 = vmatpush.msra.mxu0 %v455
        %469 = vmatpush.msra.mxu0 %v454
        %470 = vmatpush.msra.mxu0 %v453
        %471 = vmatpush.msra.mxu0 %v452
        %472 = vmatpush.msra.mxu0 %v451
        %473 = vmatpush.msra.mxu0 %v450
        %474 = vmatpush.msra.mxu0 %v449
        %475 = vmatpush.msra.mxu0 %v448
        %476 = vmatpush.msra.mxu0 %v447
        %477 = vmatpush.msra.mxu0 %v446
        %478 = vmatmul.f32.gmra.mxu0 %v280
        %v479 = vpop.f32.mrf.mxu0
        %v480 = vadd.f32 0.0, %v479
        %481 = vmatmul.f32.gmra.mxu0 %v281
        %v482 = vpop.f32.mrf.mxu0
        %v483 = vadd.f32 0.0, %v482
        %484 = vmatmul.f32.gmra.mxu0 %v282
        %v485 = vpop.f32.mrf.mxu0
        %v486 = vadd.f32 0.0, %v485
        %487 = vmatmul.f32.gmra.mxu0 %v283
        %v488 = vpop.f32.mrf.mxu0
        %v489 = vadd.f32 0.0, %v488
        %490 = vdwg.mxu0
        %v491 = vpack.c.bf16 %v480, %v480
        %v492 = vpack.c.bf16 %v483, %v483
        %v493 = vpack.c.bf16 %v486, %v486
        %v494 = vpack.c.bf16 %v489, %v489
        %495 = vst [vmem:[#allocation2 + $0x30] sm:$0xf] %v491
        %496 = vst [vmem:[#allocation2 + $0x34] sm:$0xf] %v492
        %497 = vst [vmem:[#allocation2 + $0x38] sm:$0xf] %v493
        %498 = vst [vmem:[#allocation2 + $0x3c] sm:$0xf] %v494
        %v499 = vld [vmem:[%s2] sm:$0xff]
        %v500 = vld [vmem:[%s2 + $0x8] sm:$0xff]
        %v501 = vpack.c.bf16 %v499, %v499
        %v502 = vpack.c.bf16 %v500, %v500
        %503 = vst [vmem:[#allocation2 + $0x40] sm:$0xf] %v501
        %504 = vst [vmem:[#allocation2 + $0x44] sm:$0xf] %v502
        %505 = vst [vmem:[%s6] sm:$0xff] 0.0
        %506 = vst [vmem:[%s6 + $0x8] sm:$0xff] 0.0
        %507 = vst [vmem:[%s6 + $0x10] sm:$0xff] 0.0
        %508 = vst [vmem:[%s6 + $0x18] sm:$0xff] 0.0
      $region48: #{syntactic_gcn_forward.1} parent=43 // pred_fallthru
        _
      %v509 = vlaneseq
      %v510 = vand.u32 %v509, 127
      %v511 = vadd.s32 %v510, 128
      %v512 = vld [vmem:[%s264] sm:$0xff]
      %v513 = vld [vmem:[%s264 + $0x8] sm:$0xff]
      %v514 = vld [vmem:[%s264 + $0x10] sm:$0xff]
      %v515 = vld [vmem:[%s264 + $0x18] sm:$0xff]
      %v516 = vld [vmem:[%s264 + $0x20] sm:$0xff]
      %v517 = vld [vmem:[%s264 + $0x28] sm:$0xff]
      %v518 = vld [vmem:[%s264 + $0x30] sm:$0xff]
      %v519 = vld [vmem:[%s264 + $0x38] sm:$0xff]
      %v520 = vld [vmem:[%s264 + $0x40] sm:$0xff]
      %v521 = vld [vmem:[%s264 + $0x48] sm:$0xff]
      %v522 = vld [vmem:[%s264 + $0x50] sm:$0xff]
      %v523 = vld [vmem:[%s264 + $0x58] sm:$0xff]
      %v524 = vld [vmem:[%s264 + $0x60] sm:$0xff]
      %v525 = vld [vmem:[%s264 + $0x68] sm:$0xff]
      %v526 = vld [vmem:[%s264 + $0x70] sm:$0xff]
      %v527 = vld [vmem:[%s264 + $0x78] sm:$0xff]
      %528 = vset.pattern.permute.xlu0 0
      %529 = vperm.xlu0 %528, %v512
      %v530 = vpop.permute.xlu0 %529
      %531 = vset.pattern.permute.xlu0 0
      %532 = vperm.xlu0 %531, %v513
      %v533 = vpop.permute.xlu0 %532
      %534 = vset.pattern.permute.xlu0 0
      %535 = vperm.xlu0 %534, %v514
      %v536 = vpop.permute.xlu0 %535
      %537 = vset.pattern.permute.xlu0 0
      %538 = vperm.xlu0 %537, %v515
      %v539 = vpop.permute.xlu0 %538
      %540 = vset.pattern.permute.xlu0 0
      %541 = vperm.xlu0 %540, %v516
      %v542 = vpop.permute.xlu0 %541
      %543 = vset.pattern.permute.xlu0 0
      %544 = vperm.xlu0 %543, %v517
      %v545 = vpop.permute.xlu0 %544
      %546 = vset.pattern.permute.xlu0 0
      %547 = vperm.xlu0 %546, %v518
      %v548 = vpop.permute.xlu0 %547
      %549 = vset.pattern.permute.xlu0 0
      %550 = vperm.xlu0 %549, %v519
      %v551 = vpop.permute.xlu0 %550
      %552 = vset.pattern.permute.xlu0 0
      %553 = vperm.xlu0 %552, %v520
      %v554 = vpop.permute.xlu0 %553
      %555 = vset.pattern.permute.xlu0 0
      %556 = vperm.xlu0 %555, %v521
      %v557 = vpop.permute.xlu0 %556
      %558 = vset.pattern.permute.xlu0 0
      %559 = vperm.xlu0 %558, %v522
      %v560 = vpop.permute.xlu0 %559
      %561 = vset.pattern.permute.xlu0 0
      %562 = vperm.xlu0 %561, %v523
      %v563 = vpop.permute.xlu0 %562
      %564 = vset.pattern.permute.xlu0 0
      %565 = vperm.xlu0 %564, %v524
      %v566 = vpop.permute.xlu0 %565
      %567 = vset.pattern.permute.xlu0 0
      %568 = vperm.xlu0 %567, %v525
      %v569 = vpop.permute.xlu0 %568
      %570 = vset.pattern.permute.xlu0 0
      %571 = vperm.xlu0 %570, %v526
      %v572 = vpop.permute.xlu0 %571
      %573 = vset.pattern.permute.xlu0 0
      %574 = vperm.xlu0 %573, %v527
      %v575 = vpop.permute.xlu0 %574
      %vm576 = vcmp.eq.s32.totalorder %v510, %v530
      %vm577 = vcmp.eq.s32.totalorder %v511, %v530
      %vm578 = vcmp.eq.s32.totalorder %v510, %v533
      %vm579 = vcmp.eq.s32.totalorder %v511, %v533
      %vm580 = vcmp.eq.s32.totalorder %v510, %v536
      %vm581 = vcmp.eq.s32.totalorder %v511, %v536
      %vm582 = vcmp.eq.s32.totalorder %v510, %v539
      %vm583 = vcmp.eq.s32.totalorder %v511, %v539
      %vm584 = vcmp.eq.s32.totalorder %v510, %v542
      %vm585 = vcmp.eq.s32.totalorder %v511, %v542
      %vm586 = vcmp.eq.s32.totalorder %v510, %v545
      %vm587 = vcmp.eq.s32.totalorder %v511, %v545
      %vm588 = vcmp.eq.s32.totalorder %v510, %v548
      %vm589 = vcmp.eq.s32.totalorder %v511, %v548
      %vm590 = vcmp.eq.s32.totalorder %v510, %v551
      %vm591 = vcmp.eq.s32.totalorder %v511, %v551
      %vm592 = vcmp.eq.s32.totalorder %v510, %v554
      %vm593 = vcmp.eq.s32.totalorder %v511, %v554
      %vm594 = vcmp.eq.s32.totalorder %v510, %v557
      %vm595 = vcmp.eq.s32.totalorder %v511, %v557
      %vm596 = vcmp.eq.s32.totalorder %v510, %v560
      %vm597 = vcmp.eq.s32.totalorder %v511, %v560
      %vm598 = vcmp.eq.s32.totalorder %v510, %v563
      %vm599 = vcmp.eq.s32.totalorder %v511, %v563
      %vm600 = vcmp.eq.s32.totalorder %v510, %v566
      %vm601 = vcmp.eq.s32.totalorder %v511, %v566
      %vm602 = vcmp.eq.s32.totalorder %v510, %v569
      %vm603 = vcmp.eq.s32.totalorder %v511, %v569
      %vm604 = vcmp.eq.s32.totalorder %v510, %v572
      %vm605 = vcmp.eq.s32.totalorder %v511, %v572
      %vm606 = vcmp.eq.s32.totalorder %v510, %v575
      %vm607 = vcmp.eq.s32.totalorder %v511, %v575
      %v608 = vld [vmem:[%s270] sm:$0xff]
      %v609 = vld [vmem:[%s270 + $0x8] sm:$0xff]
      %v610 = vld [vmem:[%s270 + $0x10] sm:$0xff]
      %v611 = vld [vmem:[%s270 + $0x18] sm:$0xff]
      %v612 = vld [vmem:[%s270 + $0x20] sm:$0xff]
      %v613 = vld [vmem:[%s270 + $0x28] sm:$0xff]
      %v614 = vld [vmem:[%s270 + $0x30] sm:$0xff]
      %v615 = vld [vmem:[%s270 + $0x38] sm:$0xff]
      %v616 = vld [vmem:[%s270 + $0x40] sm:$0xff]
      %v617 = vld [vmem:[%s270 + $0x48] sm:$0xff]
      %v618 = vld [vmem:[%s270 + $0x50] sm:$0xff]
      %v619 = vld [vmem:[%s270 + $0x58] sm:$0xff]
      %v620 = vld [vmem:[%s270 + $0x60] sm:$0xff]
      %v621 = vld [vmem:[%s270 + $0x68] sm:$0xff]
      %v622 = vld [vmem:[%s270 + $0x70] sm:$0xff]
      %v623 = vld [vmem:[%s270 + $0x78] sm:$0xff]
      %624 = vset.pattern.permute.xlu0 0
      %625 = vperm.xlu0 %624, %v608
      %v626 = vpop.permute.xlu0 %625
      %627 = vset.pattern.permute.xlu0 0
      %628 = vperm.xlu0 %627, %v609
      %v629 = vpop.permute.xlu0 %628
      %630 = vset.pattern.permute.xlu0 0
      %631 = vperm.xlu0 %630, %v610
      %v632 = vpop.permute.xlu0 %631
      %633 = vset.pattern.permute.xlu0 0
      %634 = vperm.xlu0 %633, %v611
      %v635 = vpop.permute.xlu0 %634
      %636 = vset.pattern.permute.xlu0 0
      %637 = vperm.xlu0 %636, %v612
      %v638 = vpop.permute.xlu0 %637
      %639 = vset.pattern.permute.xlu0 0
      %640 = vperm.xlu0 %639, %v613
      %v641 = vpop.permute.xlu0 %640
      %642 = vset.pattern.permute.xlu0 0
      %643 = vperm.xlu0 %642, %v614
      %v644 = vpop.permute.xlu0 %643
      %645 = vset.pattern.permute.xlu0 0
      %646 = vperm.xlu0 %645, %v615
      %v647 = vpop.permute.xlu0 %646
      %648 = vset.pattern.permute.xlu0 0
      %649 = vperm.xlu0 %648, %v616
      %v650 = vpop.permute.xlu0 %649
      %651 = vset.pattern.permute.xlu0 0
      %652 = vperm.xlu0 %651, %v617
      %v653 = vpop.permute.xlu0 %652
      %654 = vset.pattern.permute.xlu0 0
      %655 = vperm.xlu0 %654, %v618
      %v656 = vpop.permute.xlu0 %655
      %657 = vset.pattern.permute.xlu0 0
      %658 = vperm.xlu0 %657, %v619
      %v659 = vpop.permute.xlu0 %658
      %660 = vset.pattern.permute.xlu0 0
      %661 = vperm.xlu0 %660, %v620
      %v662 = vpop.permute.xlu0 %661
      %663 = vset.pattern.permute.xlu0 0
      %664 = vperm.xlu0 %663, %v621
      %v665 = vpop.permute.xlu0 %664
      %666 = vset.pattern.permute.xlu0 0
      %667 = vperm.xlu0 %666, %v622
      %v668 = vpop.permute.xlu0 %667
      %669 = vset.pattern.permute.xlu0 0
      %670 = vperm.xlu0 %669, %v623
      %v671 = vpop.permute.xlu0 %670
      %vm672 = vcmp.eq.s32.totalorder %v510, %v626
      %vm673 = vcmp.eq.s32.totalorder %v511, %v626
      %vm674 = vcmp.eq.s32.totalorder %v510, %v629
      %vm675 = vcmp.eq.s32.totalorder %v511, %v629
      %vm676 = vcmp.eq.s32.totalorder %v510, %v632
      %vm677 = vcmp.eq.s32.totalorder %v511, %v632
      %vm678 = vcmp.eq.s32.totalorder %v510, %v635
      %vm679 = vcmp.eq.s32.totalorder %v511, %v635
      %vm680 = vcmp.eq.s32.totalorder %v510, %v638
      %vm681 = vcmp.eq.s32.totalorder %v511, %v638
      %vm682 = vcmp.eq.s32.totalorder %v510, %v641
      %vm683 = vcmp.eq.s32.totalorder %v511, %v641
      %vm684 = vcmp.eq.s32.totalorder %v510, %v644
      %vm685 = vcmp.eq.s32.totalorder %v511, %v644
      %vm686 = vcmp.eq.s32.totalorder %v510, %v647
      %vm687 = vcmp.eq.s32.totalorder %v511, %v647
      %vm688 = vcmp.eq.s32.totalorder %v510, %v650
      %vm689 = vcmp.eq.s32.totalorder %v511, %v650
      %vm690 = vcmp.eq.s32.totalorder %v510, %v653
      %vm691 = vcmp.eq.s32.totalorder %v511, %v653
      %vm692 = vcmp.eq.s32.totalorder %v510, %v656
      %vm693 = vcmp.eq.s32.totalorder %v511, %v656
      %vm694 = vcmp.eq.s32.totalorder %v510, %v659
      %vm695 = vcmp.eq.s32.totalorder %v511, %v659
      %vm696 = vcmp.eq.s32.totalorder %v510, %v662
      %vm697 = vcmp.eq.s32.totalorder %v511, %v662
      %vm698 = vcmp.eq.s32.totalorder %v510, %v665
      %vm699 = vcmp.eq.s32.totalorder %v511, %v665
      %vm700 = vcmp.eq.s32.totalorder %v510, %v668
      %vm701 = vcmp.eq.s32.totalorder %v511, %v668
      %vm702 = vcmp.eq.s32.totalorder %v510, %v671
      %vm703 = vcmp.eq.s32.totalorder %v511, %v671
      %vm704 = vmor %vm576, %vm672
      %vm705 = vmor %vm577, %vm673
      %vm706 = vmor %vm578, %vm674
      %vm707 = vmor %vm579, %vm675
      %vm708 = vmor %vm580, %vm676
      %vm709 = vmor %vm581, %vm677
      %vm710 = vmor %vm582, %vm678
      %vm711 = vmor %vm583, %vm679
      %vm712 = vmor %vm584, %vm680
      %vm713 = vmor %vm585, %vm681
      %vm714 = vmor %vm586, %vm682
      %vm715 = vmor %vm587, %vm683
      %vm716 = vmor %vm588, %vm684
      %vm717 = vmor %vm589, %vm685
      %vm718 = vmor %vm590, %vm686
      %vm719 = vmor %vm591, %vm687
      %vm720 = vmor %vm592, %vm688
      %vm721 = vmor %vm593, %vm689
      %vm722 = vmor %vm594, %vm690
      %vm723 = vmor %vm595, %vm691
      %vm724 = vmor %vm596, %vm692
      %vm725 = vmor %vm597, %vm693
      %vm726 = vmor %vm598, %vm694
      %vm727 = vmor %vm599, %vm695
      %vm728 = vmor %vm600, %vm696
      %vm729 = vmor %vm601, %vm697
      %vm730 = vmor %vm602, %vm698
      %vm731 = vmor %vm603, %vm699
      %vm732 = vmor %vm604, %vm700
      %vm733 = vmor %vm605, %vm701
      %vm734 = vmor %vm606, %vm702
      %vm735 = vmor %vm607, %vm703
      %v736 = vsel %vm704, 1, 0
      %v737 = vsel %vm705, 1, 0
      %v738 = vsel %vm706, 1, 0
      %v739 = vsel %vm707, 1, 0
      %v740 = vsel %vm708, 1, 0
      %v741 = vsel %vm709, 1, 0
      %v742 = vsel %vm710, 1, 0
      %v743 = vsel %vm711, 1, 0
      %v744 = vsel %vm712, 1, 0
      %v745 = vsel %vm713, 1, 0
      %v746 = vsel %vm714, 1, 0
      %v747 = vsel %vm715, 1, 0
      %v748 = vsel %vm716, 1, 0
      %v749 = vsel %vm717, 1, 0
      %v750 = vsel %vm718, 1, 0
      %v751 = vsel %vm719, 1, 0
      %v752 = vsel %vm720, 1, 0
      %v753 = vsel %vm721, 1, 0
      %v754 = vsel %vm722, 1, 0
      %v755 = vsel %vm723, 1, 0
      %v756 = vsel %vm724, 1, 0
      %v757 = vsel %vm725, 1, 0
      %v758 = vsel %vm726, 1, 0
      %v759 = vsel %vm727, 1, 0
      %v760 = vsel %vm728, 1, 0
      %v761 = vsel %vm729, 1, 0
      %v762 = vsel %vm730, 1, 0
      %v763 = vsel %vm731, 1, 0
      %v764 = vsel %vm732, 1, 0
      %v765 = vsel %vm733, 1, 0
      %v766 = vsel %vm734, 1, 0
      %v767 = vsel %vm735, 1, 0
      %v768 = vcvt.s32.f32 %v736
      %v769 = vcvt.s32.f32 %v737
      %v770 = vcvt.s32.f32 %v738
      %v771 = vcvt.s32.f32 %v739
      %v772 = vcvt.s32.f32 %v740
      %v773 = vcvt.s32.f32 %v741
      %v774 = vcvt.s32.f32 %v742
      %v775 = vcvt.s32.f32 %v743
      %v776 = vcvt.s32.f32 %v744
      %v777 = vcvt.s32.f32 %v745
      %v778 = vcvt.s32.f32 %v746
      %v779 = vcvt.s32.f32 %v747
      %v780 = vcvt.s32.f32 %v748
      %v781 = vcvt.s32.f32 %v749
      %v782 = vcvt.s32.f32 %v750
      %v783 = vcvt.s32.f32 %v751
      %v784 = vcvt.s32.f32 %v752
      %v785 = vcvt.s32.f32 %v753
      %v786 = vcvt.s32.f32 %v754
      %v787 = vcvt.s32.f32 %v755
      %v788 = vcvt.s32.f32 %v756
      %v789 = vcvt.s32.f32 %v757
      %v790 = vcvt.s32.f32 %v758
      %v791 = vcvt.s32.f32 %v759
      %v792 = vcvt.s32.f32 %v760
      %v793 = vcvt.s32.f32 %v761
      %v794 = vcvt.s32.f32 %v762
      %v795 = vcvt.s32.f32 %v763
      %v796 = vcvt.s32.f32 %v764
      %v797 = vcvt.s32.f32 %v765
      %v798 = vcvt.s32.f32 %v766
      %v799 = vcvt.s32.f32 %v767
      %v800 = vpack.c.bf16 %v770, %v768
      %v801 = vpack.c.bf16 %v771, %v769
      %v802 = vpack.c.bf16 %v774, %v772
      %v803 = vpack.c.bf16 %v775, %v773
      %v804 = vpack.c.bf16 %v778, %v776
      %v805 = vpack.c.bf16 %v779, %v777
      %v806 = vpack.c.bf16 %v782, %v780
      %v807 = vpack.c.bf16 %v783, %v781
      %v808 = vpack.c.bf16 %v786, %v784
      %v809 = vpack.c.bf16 %v787, %v785
      %v810 = vpack.c.bf16 %v790, %v788
      %v811 = vpack.c.bf16 %v791, %v789
      %v812 = vpack.c.bf16 %v794, %v792
      %v813 = vpack.c.bf16 %v795, %v793
      %v814 = vpack.c.bf16 %v798, %v796
      %v815 = vpack.c.bf16 %v799, %v797
      %v816 = vld [vmem:[#allocation2] sm:$0xf]
      %v817 = vld [vmem:[#allocation2 + $0x4] sm:$0xf]
      %v818 = vld [vmem:[#allocation2 + $0x8] sm:$0xf]
      %v819 = vld [vmem:[#allocation2 + $0xc] sm:$0xf]
      %v820 = vld [vmem:[#allocation2 + $0x10] sm:$0xf]
      %v821 = vld [vmem:[#allocation2 + $0x14] sm:$0xf]
      %v822 = vld [vmem:[#allocation2 + $0x18] sm:$0xf]
      %v823 = vld [vmem:[#allocation2 + $0x1c] sm:$0xf]
      %v824 = vld [vmem:[#allocation2 + $0x20] sm:$0xf]
      %v825 = vld [vmem:[#allocation2 + $0x24] sm:$0xf]
      %v826 = vld [vmem:[#allocation2 + $0x28] sm:$0xf]
      %v827 = vld [vmem:[#allocation2 + $0x2c] sm:$0xf]
      %v828 = vld [vmem:[#allocation2 + $0x30] sm:$0xf]
      %v829 = vld [vmem:[#allocation2 + $0x34] sm:$0xf]
      %v830 = vld [vmem:[#allocation2 + $0x38] sm:$0xf]
      %v831 = vld [vmem:[#allocation2 + $0x3c] sm:$0xf]
      %v832 = vld [vmem:[#allocation2 + $0x40] sm:$0xf]
      %v833 = vld [vmem:[#allocation2 + $0x44] sm:$0xf]
      %v852 = vunpack.c.l.b16 %v816
      %v853 = vunpack.c.l.b16 %v817
      %v854 = vunpack.c.l.b16 %v818
      %v855 = vunpack.c.l.b16 %v819
      %v856 = vunpack.c.l.b16 %v820
      %v857 = vunpack.c.l.b16 %v821
      %v858 = vunpack.c.l.b16 %v822
      %v859 = vunpack.c.l.b16 %v823
      %v860 = vunpack.c.l.b16 %v824
      %v861 = vunpack.c.l.b16 %v825
      %v862 = vunpack.c.l.b16 %v826
      %v863 = vunpack.c.l.b16 %v827
      %v864 = vunpack.c.l.b16 %v828
      %v865 = vunpack.c.l.b16 %v829
      %v866 = vunpack.c.l.b16 %v830
      %v867 = vunpack.c.l.b16 %v831
      %v868 = vunpack.c.l.b16 %v832
      %v869 = vunpack.c.l.b16 %v833
      %v870 = vpack.c.b16 %v853, %v852
      %v871 = vpack.c.b16 %v855, %v854
      %v872 = vpack.c.b16 %v857, %v856
      %v873 = vpack.c.b16 %v859, %v858
      %v874 = vpack.c.b16 %v861, %v860
      %v875 = vpack.c.b16 %v863, %v862
      %v876 = vpack.c.b16 %v865, %v864
      %v877 = vpack.c.b16 %v867, %v866
      %v878 = vpack.c.b16 %v869, %v868
      %vm888 = vcmask 130048
      %v890 = vsel %vm888, %v801, 0
      %v893 = vsel %vm888, %v803, 0
      %v896 = vsel %vm888, %v805, 0
      %v899 = vsel %vm888, %v807, 0
      %v902 = vsel %vm888, %v809, 0
      %v905 = vsel %vm888, %v811, 0
      %v908 = vsel %vm888, %v813, 0
      %v911 = vsel %vm888, %v815, 0
      %913 = vmatpush.bf16.msra.mxu0 %v877
      %914 = vmatpush.bf16.msra.mxu0 %v876
      %915 = vmatpush.bf16.msra.mxu0 %v875
      %916 = vmatpush.bf16.msra.mxu0 %v874
      %917 = vmatpush.bf16.msra.mxu0 %v873
      %918 = vmatpush.bf16.msra.mxu0 %v872
      %919 = vmatpush.bf16.msra.mxu0 %v871
      %920 = vmatpush.bf16.msra.mxu0 %v870
      %921 = vmatmul.bf16.gmra.mxu0 %v800
      %v922 = vpop.f32.mrf.mxu0
      %v923 = vadd.f32 0.0, %v922
      %v924 = vpop.f32.mrf.mxu0
      %v925 = vadd.f32 0.0, %v924
      %926 = vmatmul.bf16.gmra.mxu0 %v802
      %v927 = vpop.f32.mrf.mxu0
      %v928 = vadd.f32 0.0, %v927
      %v929 = vpop.f32.mrf.mxu0
      %v930 = vadd.f32 0.0, %v929
      %931 = vmatmul.bf16.gmra.mxu0 %v804
      %v932 = vpop.f32.mrf.mxu0
      %v933 = vadd.f32 0.0, %v932
      %v934 = vpop.f32.mrf.mxu0
      %v935 = vadd.f32 0.0, %v934
      %936 = vmatmul.bf16.gmra.mxu0 %v806
      %v937 = vpop.f32.mrf.mxu0
      %v938 = vadd.f32 0.0, %v937
      %v939 = vpop.f32.mrf.mxu0
      %v940 = vadd.f32 0.0, %v939
      %941 = vmatmul.bf16.gmra.mxu0 %v808
      %v942 = vpop.f32.mrf.mxu0
      %v943 = vadd.f32 0.0, %v942
      %v944 = vpop.f32.mrf.mxu0
      %v945 = vadd.f32 0.0, %v944
      %946 = vmatmul.bf16.gmra.mxu0 %v810
      %v947 = vpop.f32.mrf.mxu0
      %v948 = vadd.f32 0.0, %v947
      %v949 = vpop.f32.mrf.mxu0
      %v950 = vadd.f32 0.0, %v949
      %951 = vmatmul.bf16.gmra.mxu0 %v812
      %v952 = vpop.f32.mrf.mxu0
      %v953 = vadd.f32 0.0, %v952
      %v954 = vpop.f32.mrf.mxu0
      %v955 = vadd.f32 0.0, %v954
      %956 = vmatmul.bf16.gmra.mxu0 %v814
      %v957 = vpop.f32.mrf.mxu0
      %v958 = vadd.f32 0.0, %v957
      %v959 = vpop.f32.mrf.mxu0
      %v960 = vadd.f32 0.0, %v959
      %961 = vdwg.mxu0
      %962 = vmatpush.bf16.msra.mxu0 0
      %963 = vmatpush.bf16.msra.mxu0 0
      %964 = vmatpush.bf16.msra.mxu0 0
      %965 = vmatpush.bf16.msra.mxu0 0
      %966 = vmatpush.bf16.msra.mxu0 0
      %967 = vmatpush.bf16.msra.mxu0 0
      %968 = vmatpush.bf16.msra.mxu0 0
      %969 = vmatpush.bf16.msra.mxu0 %v878
      %970 = vmatmul.bf16.gmra.mxu0 %v890
      %v971 = vpop.f32.mrf.mxu0
      %v972 = vadd.f32 %v923, %v971
      %v973 = vpop.f32.mrf.mxu0
      %v974 = vadd.f32 %v925, %v973
      %975 = vmatmul.bf16.gmra.mxu0 %v893
      %v976 = vpop.f32.mrf.mxu0
      %v977 = vadd.f32 %v928, %v976
      %v978 = vpop.f32.mrf.mxu0
      %v979 = vadd.f32 %v930, %v978
      %980 = vmatmul.bf16.gmra.mxu0 %v896
      %v981 = vpop.f32.mrf.mxu0
      %v982 = vadd.f32 %v933, %v981
      %v983 = vpop.f32.mrf.mxu0
      %v984 = vadd.f32 %v935, %v983
      %985 = vmatmul.bf16.gmra.mxu0 %v899
      %v986 = vpop.f32.mrf.mxu0
      %v987 = vadd.f32 %v938, %v986
      %v988 = vpop.f32.mrf.mxu0
      %v989 = vadd.f32 %v940, %v988
      %990 = vmatmul.bf16.gmra.mxu0 %v902
      %v991 = vpop.f32.mrf.mxu0
      %v992 = vadd.f32 %v943, %v991
      %v993 = vpop.f32.mrf.mxu0
      %v994 = vadd.f32 %v945, %v993
      %995 = vmatmul.bf16.gmra.mxu0 %v905
      %v996 = vpop.f32.mrf.mxu0
      %v997 = vadd.f32 %v948, %v996
      %v998 = vpop.f32.mrf.mxu0
      %v999 = vadd.f32 %v950, %v998
      %1000 = vmatmul.bf16.gmra.mxu0 %v908
      %v1001 = vpop.f32.mrf.mxu0
      %v1002 = vadd.f32 %v953, %v1001
      %v1003 = vpop.f32.mrf.mxu0
      %v1004 = vadd.f32 %v955, %v1003
      %1005 = vmatmul.bf16.gmra.mxu0 %v911
      %v1006 = vpop.f32.mrf.mxu0
      %v1007 = vadd.f32 %v958, %v1006
      %v1008 = vpop.f32.mrf.mxu0
      %v1009 = vadd.f32 %v960, %v1008
      %1010 = vdwg.mxu0
      %v1011 = vxor.u32 %v972, 2147483648
      %v1012 = vxor.u32 %v974, 2147483648
      %v1013 = vxor.u32 %v977, 2147483648
      %v1014 = vxor.u32 %v979, 2147483648
      %v1015 = vxor.u32 %v982, 2147483648
      %v1016 = vxor.u32 %v984, 2147483648
      %v1017 = vxor.u32 %v987, 2147483648
      %v1018 = vxor.u32 %v989, 2147483648
      %v1019 = vxor.u32 %v992, 2147483648
      %v1020 = vxor.u32 %v994, 2147483648
      %v1021 = vxor.u32 %v997, 2147483648
      %v1022 = vxor.u32 %v999, 2147483648
      %v1023 = vxor.u32 %v1002, 2147483648
      %v1024 = vxor.u32 %v1004, 2147483648
      %v1025 = vxor.u32 %v1007, 2147483648
      %v1026 = vxor.u32 %v1009, 2147483648
      %v1027 = vmul.f32 %v1011, 1.442695
      %v1028 = vpow.pop %v1027
      %v1029 = vmul.f32 %v1012, 1.442695
      %v1030 = vpow.pop %v1029
      %v1031 = vmul.f32 %v1013, 1.442695
      %v1032 = vpow.pop %v1031
      %v1033 = vmul.f32 %v1014, 1.442695
      %v1034 = vpow.pop %v1033
      %v1035 = vmul.f32 %v1015, 1.442695
      %v1036 = vpow.pop %v1035
      %v1037 = vmul.f32 %v1016, 1.442695
      %v1038 = vpow.pop %v1037
      %v1039 = vmul.f32 %v1017, 1.442695
      %v1040 = vpow.pop %v1039
      %v1041 = vmul.f32 %v1018, 1.442695
      %v1042 = vpow.pop %v1041
      %v1043 = vmul.f32 %v1019, 1.442695
      %v1044 = vpow.pop %v1043
      %v1045 = vmul.f32 %v1020, 1.442695
      %v1046 = vpow.pop %v1045
      %v1047 = vmul.f32 %v1021, 1.442695
      %v1048 = vpow.pop %v1047
      %v1049 = vmul.f32 %v1022, 1.442695
      %v1050 = vpow.pop %v1049
      %v1051 = vmul.f32 %v1023, 1.442695
      %v1052 = vpow.pop %v1051
      %v1053 = vmul.f32 %v1024, 1.442695
      %v1054 = vpow.pop %v1053
      %v1055 = vmul.f32 %v1025, 1.442695
      %v1056 = vpow.pop %v1055
      %v1057 = vmul.f32 %v1026, 1.442695
      %v1058 = vpow.pop %v1057
      %v1059 = vadd.f32 %v1028, 1.0
      %v1060 = vadd.f32 %v1030, 1.0
      %v1061 = vadd.f32 %v1032, 1.0
      %v1062 = vadd.f32 %v1034, 1.0
      %v1063 = vadd.f32 %v1036, 1.0
      %v1064 = vadd.f32 %v1038, 1.0
      %v1065 = vadd.f32 %v1040, 1.0
      %v1066 = vadd.f32 %v1042, 1.0
      %v1067 = vadd.f32 %v1044, 1.0
      %v1068 = vadd.f32 %v1046, 1.0
      %v1069 = vadd.f32 %v1048, 1.0
      %v1070 = vadd.f32 %v1050, 1.0
      %v1071 = vadd.f32 %v1052, 1.0
      %v1072 = vadd.f32 %v1054, 1.0
      %v1073 = vadd.f32 %v1056, 1.0
      %v1074 = vadd.f32 %v1058, 1.0
      %v1075 = vrcp.pop %v1059
      %v1076 = vmul.f32 %v1059, %v1075
      %v1077 = vsub.f32 1.0, %v1076
      %v1078 = vmul.f32 %v1075, %v1077
      %v1079 = vadd.f32 %v1075, %v1078
      %vm1080 = vweird.f32 %v1059
      %vm1081 = vweird.f32 %v1075
      %vm1082 = vmor %vm1080, %vm1081
      %v1083 = vsel %vm1082, %v1075, %v1079
      %v1084 = vand.u32 2147483647, %v1059
      %vm1085 = vcmp.eq.f32.partialorder %v1084, 8.507059e+37
      %v1086 = vand.u32 %v1059, 2147483648
      %v1087 = vor.u32 1.1754944e-38, %v1086
      %v1088 = vsel %vm1085, %v1087, %v1083
      %v1089 = vmul.f32 1.0, %v1088
      %v1090 = vrcp.pop %v1060
      %v1091 = vmul.f32 %v1060, %v1090
      %v1092 = vsub.f32 1.0, %v1091
      %v1093 = vmul.f32 %v1090, %v1092
      %v1094 = vadd.f32 %v1090, %v1093
      %vm1095 = vweird.f32 %v1060
      %vm1096 = vweird.f32 %v1090
      %vm1097 = vmor %vm1095, %vm1096
      %v1098 = vsel %vm1097, %v1090, %v1094
      %v1099 = vand.u32 2147483647, %v1060
      %vm1100 = vcmp.eq.f32.partialorder %v1099, 8.507059e+37
      %v1101 = vand.u32 %v1060, 2147483648
      %v1102 = vor.u32 1.1754944e-38, %v1101
      %v1103 = vsel %vm1100, %v1102, %v1098
      %v1104 = vmul.f32 1.0, %v1103
      %v1105 = vrcp.pop %v1061
      %v1106 = vmul.f32 %v1061, %v1105
      %v1107 = vsub.f32 1.0, %v1106
      %v1108 = vmul.f32 %v1105, %v1107
      %v1109 = vadd.f32 %v1105, %v1108
      %vm1110 = vweird.f32 %v1061
      %vm1111 = vweird.f32 %v1105
      %vm1112 = vmor %vm1110, %vm1111
      %v1113 = vsel %vm1112, %v1105, %v1109
      %v1114 = vand.u32 2147483647, %v1061
      %vm1115 = vcmp.eq.f32.partialorder %v1114, 8.507059e+37
      %v1116 = vand.u32 %v1061, 2147483648
      %v1117 = vor.u32 1.1754944e-38, %v1116
      %v1118 = vsel %vm1115, %v1117, %v1113
      %v1119 = vmul.f32 1.0, %v1118
      %v1120 = vrcp.pop %v1062
      %v1121 = vmul.f32 %v1062, %v1120
      %v1122 = vsub.f32 1.0, %v1121
      %v1123 = vmul.f32 %v1120, %v1122
      %v1124 = vadd.f32 %v1120, %v1123
      %vm1125 = vweird.f32 %v1062
      %vm1126 = vweird.f32 %v1120
      %vm1127 = vmor %vm1125, %vm1126
      %v1128 = vsel %vm1127, %v1120, %v1124
      %v1129 = vand.u32 2147483647, %v1062
      %vm1130 = vcmp.eq.f32.partialorder %v1129, 8.507059e+37
      %v1131 = vand.u32 %v1062, 2147483648
      %v1132 = vor.u32 1.1754944e-38, %v1131
      %v1133 = vsel %vm1130, %v1132, %v1128
      %v1134 = vmul.f32 1.0, %v1133
      %v1135 = vrcp.pop %v1063
      %v1136 = vmul.f32 %v1063, %v1135
      %v1137 = vsub.f32 1.0, %v1136
      %v1138 = vmul.f32 %v1135, %v1137
      %v1139 = vadd.f32 %v1135, %v1138
      %vm1140 = vweird.f32 %v1063
      %vm1141 = vweird.f32 %v1135
      %vm1142 = vmor %vm1140, %vm1141
      %v1143 = vsel %vm1142, %v1135, %v1139
      %v1144 = vand.u32 2147483647, %v1063
      %vm1145 = vcmp.eq.f32.partialorder %v1144, 8.507059e+37
      %v1146 = vand.u32 %v1063, 2147483648
      %v1147 = vor.u32 1.1754944e-38, %v1146
      %v1148 = vsel %vm1145, %v1147, %v1143
      %v1149 = vmul.f32 1.0, %v1148
      %v1150 = vrcp.pop %v1064
      %v1151 = vmul.f32 %v1064, %v1150
      %v1152 = vsub.f32 1.0, %v1151
      %v1153 = vmul.f32 %v1150, %v1152
      %v1154 = vadd.f32 %v1150, %v1153
      %vm1155 = vweird.f32 %v1064
      %vm1156 = vweird.f32 %v1150
      %vm1157 = vmor %vm1155, %vm1156
      %v1158 = vsel %vm1157, %v1150, %v1154
      %v1159 = vand.u32 2147483647, %v1064
      %vm1160 = vcmp.eq.f32.partialorder %v1159, 8.507059e+37
      %v1161 = vand.u32 %v1064, 2147483648
      %v1162 = vor.u32 1.1754944e-38, %v1161
      %v1163 = vsel %vm1160, %v1162, %v1158
      %v1164 = vmul.f32 1.0, %v1163
      %v1165 = vrcp.pop %v1065
      %v1166 = vmul.f32 %v1065, %v1165
      %v1167 = vsub.f32 1.0, %v1166
      %v1168 = vmul.f32 %v1165, %v1167
      %v1169 = vadd.f32 %v1165, %v1168
      %vm1170 = vweird.f32 %v1065
      %vm1171 = vweird.f32 %v1165
      %vm1172 = vmor %vm1170, %vm1171
      %v1173 = vsel %vm1172, %v1165, %v1169
      %v1174 = vand.u32 2147483647, %v1065
      %vm1175 = vcmp.eq.f32.partialorder %v1174, 8.507059e+37
      %v1176 = vand.u32 %v1065, 2147483648
      %v1177 = vor.u32 1.1754944e-38, %v1176
      %v1178 = vsel %vm1175, %v1177, %v1173
      %v1179 = vmul.f32 1.0, %v1178
      %v1180 = vrcp.pop %v1066
      %v1181 = vmul.f32 %v1066, %v1180
      %v1182 = vsub.f32 1.0, %v1181
      %v1183 = vmul.f32 %v1180, %v1182
      %v1184 = vadd.f32 %v1180, %v1183
      %vm1185 = vweird.f32 %v1066
      %vm1186 = vweird.f32 %v1180
      %vm1187 = vmor %vm1185, %vm1186
      %v1188 = vsel %vm1187, %v1180, %v1184
      %v1189 = vand.u32 2147483647, %v1066
      %vm1190 = vcmp.eq.f32.partialorder %v1189, 8.507059e+37
      %v1191 = vand.u32 %v1066, 2147483648
      %v1192 = vor.u32 1.1754944e-38, %v1191
      %v1193 = vsel %vm1190, %v1192, %v1188
      %v1194 = vmul.f32 1.0, %v1193
      %v1195 = vrcp.pop %v1067
      %v1196 = vmul.f32 %v1067, %v1195
      %v1197 = vsub.f32 1.0, %v1196
      %v1198 = vmul.f32 %v1195, %v1197
      %v1199 = vadd.f32 %v1195, %v1198
      %vm1200 = vweird.f32 %v1067
      %vm1201 = vweird.f32 %v1195
      %vm1202 = vmor %vm1200, %vm1201
      %v1203 = vsel %vm1202, %v1195, %v1199
      %v1204 = vand.u32 2147483647, %v1067
      %vm1205 = vcmp.eq.f32.partialorder %v1204, 8.507059e+37
      %v1206 = vand.u32 %v1067, 2147483648
      %v1207 = vor.u32 1.1754944e-38, %v1206
      %v1208 = vsel %vm1205, %v1207, %v1203
      %v1209 = vmul.f32 1.0, %v1208
      %v1210 = vrcp.pop %v1068
      %v1211 = vmul.f32 %v1068, %v1210
      %v1212 = vsub.f32 1.0, %v1211
      %v1213 = vmul.f32 %v1210, %v1212
      %v1214 = vadd.f32 %v1210, %v1213
      %vm1215 = vweird.f32 %v1068
      %vm1216 = vweird.f32 %v1210
      %vm1217 = vmor %vm1215, %vm1216
      %v1218 = vsel %vm1217, %v1210, %v1214
      %v1219 = vand.u32 2147483647, %v1068
      %vm1220 = vcmp.eq.f32.partialorder %v1219, 8.507059e+37
      %v1221 = vand.u32 %v1068, 2147483648
      %v1222 = vor.u32 1.1754944e-38, %v1221
      %v1223 = vsel %vm1220, %v1222, %v1218
      %v1224 = vmul.f32 1.0, %v1223
      %v1225 = vrcp.pop %v1069
      %v1226 = vmul.f32 %v1069, %v1225
      %v1227 = vsub.f32 1.0, %v1226
      %v1228 = vmul.f32 %v1225, %v1227
      %v1229 = vadd.f32 %v1225, %v1228
      %vm1230 = vweird.f32 %v1069
      %vm1231 = vweird.f32 %v1225
      %vm1232 = vmor %vm1230, %vm1231
      %v1233 = vsel %vm1232, %v1225, %v1229
      %v1234 = vand.u32 2147483647, %v1069
      %vm1235 = vcmp.eq.f32.partialorder %v1234, 8.507059e+37
      %v1236 = vand.u32 %v1069, 2147483648
      %v1237 = vor.u32 1.1754944e-38, %v1236
      %v1238 = vsel %vm1235, %v1237, %v1233
      %v1239 = vmul.f32 1.0, %v1238
      %v1240 = vrcp.pop %v1070
      %v1241 = vmul.f32 %v1070, %v1240
      %v1242 = vsub.f32 1.0, %v1241
      %v1243 = vmul.f32 %v1240, %v1242
      %v1244 = vadd.f32 %v1240, %v1243
      %vm1245 = vweird.f32 %v1070
      %vm1246 = vweird.f32 %v1240
      %vm1247 = vmor %vm1245, %vm1246
      %v1248 = vsel %vm1247, %v1240, %v1244
      %v1249 = vand.u32 2147483647, %v1070
      %vm1250 = vcmp.eq.f32.partialorder %v1249, 8.507059e+37
      %v1251 = vand.u32 %v1070, 2147483648
      %v1252 = vor.u32 1.1754944e-38, %v1251
      %v1253 = vsel %vm1250, %v1252, %v1248
      %v1254 = vmul.f32 1.0, %v1253
      %v1255 = vrcp.pop %v1071
      %v1256 = vmul.f32 %v1071, %v1255
      %v1257 = vsub.f32 1.0, %v1256
      %v1258 = vmul.f32 %v1255, %v1257
      %v1259 = vadd.f32 %v1255, %v1258
      %vm1260 = vweird.f32 %v1071
      %vm1261 = vweird.f32 %v1255
      %vm1262 = vmor %vm1260, %vm1261
      %v1263 = vsel %vm1262, %v1255, %v1259
      %v1264 = vand.u32 2147483647, %v1071
      %vm1265 = vcmp.eq.f32.partialorder %v1264, 8.507059e+37
      %v1266 = vand.u32 %v1071, 2147483648
      %v1267 = vor.u32 1.1754944e-38, %v1266
      %v1268 = vsel %vm1265, %v1267, %v1263
      %v1269 = vmul.f32 1.0, %v1268
      %v1270 = vrcp.pop %v1072
      %v1271 = vmul.f32 %v1072, %v1270
      %v1272 = vsub.f32 1.0, %v1271
      %v1273 = vmul.f32 %v1270, %v1272
      %v1274 = vadd.f32 %v1270, %v1273
      %vm1275 = vweird.f32 %v1072
      %vm1276 = vweird.f32 %v1270
      %vm1277 = vmor %vm1275, %vm1276
      %v1278 = vsel %vm1277, %v1270, %v1274
      %v1279 = vand.u32 2147483647, %v1072
      %vm1280 = vcmp.eq.f32.partialorder %v1279, 8.507059e+37
      %v1281 = vand.u32 %v1072, 2147483648
      %v1282 = vor.u32 1.1754944e-38, %v1281
      %v1283 = vsel %vm1280, %v1282, %v1278
      %v1284 = vmul.f32 1.0, %v1283
      %v1285 = vrcp.pop %v1073
      %v1286 = vmul.f32 %v1073, %v1285
      %v1287 = vsub.f32 1.0, %v1286
      %v1288 = vmul.f32 %v1285, %v1287
      %v1289 = vadd.f32 %v1285, %v1288
      %vm1290 = vweird.f32 %v1073
      %vm1291 = vweird.f32 %v1285
      %vm1292 = vmor %vm1290, %vm1291
      %v1293 = vsel %vm1292, %v1285, %v1289
      %v1294 = vand.u32 2147483647, %v1073
      %vm1295 = vcmp.eq.f32.partialorder %v1294, 8.507059e+37
      %v1296 = vand.u32 %v1073, 2147483648
      %v1297 = vor.u32 1.1754944e-38, %v1296
      %v1298 = vsel %vm1295, %v1297, %v1293
      %v1299 = vmul.f32 1.0, %v1298
      %v1300 = vrcp.pop %v1074
      %v1301 = vmul.f32 %v1074, %v1300
      %v1302 = vsub.f32 1.0, %v1301
      %v1303 = vmul.f32 %v1300, %v1302
      %v1304 = vadd.f32 %v1300, %v1303
      %vm1305 = vweird.f32 %v1074
      %vm1306 = vweird.f32 %v1300
      %vm1307 = vmor %vm1305, %vm1306
      %v1308 = vsel %vm1307, %v1300, %v1304
      %v1309 = vand.u32 2147483647, %v1074
      %vm1310 = vcmp.eq.f32.partialorder %v1309, 8.507059e+37
      %v1311 = vand.u32 %v1074, 2147483648
      %v1312 = vor.u32 1.1754944e-38, %v1311
      %v1313 = vsel %vm1310, %v1312, %v1308
      %v1314 = vmul.f32 1.0, %v1313
      %1316 = vset.pattern.permute.xlu0 32
      %1317 = vperm.xlu0 %1316, %v1089
      %v1318 = vpop.permute.xlu0 %1317
      %1321 = vset.pattern.permute.xlu0 32
      %1322 = vperm.xlu0 %1321, %v1104
      %v1323 = vpop.permute.xlu0 %1322
      %1326 = vset.pattern.permute.xlu0 32
      %1327 = vperm.xlu0 %1326, %v1119
      %v1328 = vpop.permute.xlu0 %1327
      %1331 = vset.pattern.permute.xlu0 32
      %1332 = vperm.xlu0 %1331, %v1134
      %v1333 = vpop.permute.xlu0 %1332
      %1336 = vset.pattern.permute.xlu0 32
      %1337 = vperm.xlu0 %1336, %v1149
      %v1338 = vpop.permute.xlu0 %1337
      %1341 = vset.pattern.permute.xlu0 32
      %1342 = vperm.xlu0 %1341, %v1164
      %v1343 = vpop.permute.xlu0 %1342
      %1346 = vset.pattern.permute.xlu0 32
      %1347 = vperm.xlu0 %1346, %v1179
      %v1348 = vpop.permute.xlu0 %1347
      %1351 = vset.pattern.permute.xlu0 32
      %1352 = vperm.xlu0 %1351, %v1194
      %v1353 = vpop.permute.xlu0 %1352
      %1356 = vset.pattern.permute.xlu0 32
      %1357 = vperm.xlu0 %1356, %v1209
      %v1358 = vpop.permute.xlu0 %1357
      %1361 = vset.pattern.permute.xlu0 32
      %1362 = vperm.xlu0 %1361, %v1224
      %v1363 = vpop.permute.xlu0 %1362
      %1366 = vset.pattern.permute.xlu0 32
      %1367 = vperm.xlu0 %1366, %v1239
      %v1368 = vpop.permute.xlu0 %1367
      %1371 = vset.pattern.permute.xlu0 32
      %1372 = vperm.xlu0 %1371, %v1254
      %v1373 = vpop.permute.xlu0 %1372
      %1376 = vset.pattern.permute.xlu0 32
      %1377 = vperm.xlu0 %1376, %v1269
      %v1378 = vpop.permute.xlu0 %1377
      %1381 = vset.pattern.permute.xlu0 32
      %1382 = vperm.xlu0 %1381, %v1284
      %v1383 = vpop.permute.xlu0 %1382
      %1386 = vset.pattern.permute.xlu0 32
      %1387 = vperm.xlu0 %1386, %v1299
      %v1388 = vpop.permute.xlu0 %1387
      %1391 = vset.pattern.permute.xlu0 32
      %1392 = vperm.xlu0 %1391, %v1314
      %v1393 = vpop.permute.xlu0 %1392
      %v1395 = vmul.f32 %v972, %v1318
      %v1396 = vmul.f32 %v974, %v1323
      %v1397 = vmul.f32 %v977, %v1328
      %v1398 = vmul.f32 %v979, %v1333
      %v1399 = vmul.f32 %v982, %v1338
      %v1400 = vmul.f32 %v984, %v1343
      %v1401 = vmul.f32 %v987, %v1348
      %v1402 = vmul.f32 %v989, %v1353
      %v1403 = vmul.f32 %v992, %v1358
      %v1404 = vmul.f32 %v994, %v1363
      %v1405 = vmul.f32 %v997, %v1368
      %v1406 = vmul.f32 %v999, %v1373
      %v1407 = vmul.f32 %v1002, %v1378
      %v1408 = vmul.f32 %v1004, %v1383
      %v1409 = vmul.f32 %v1007, %v1388
      %v1410 = vmul.f32 %v1009, %v1393
      %v1411 = vpack.c.bf16 %v1396, %v1395
      %v1412 = vpack.c.bf16 %v1398, %v1397
      %v1413 = vpack.c.bf16 %v1400, %v1399
      %v1414 = vpack.c.bf16 %v1402, %v1401
      %v1415 = vpack.c.bf16 %v1404, %v1403
      %v1416 = vpack.c.bf16 %v1406, %v1405
      %v1417 = vpack.c.bf16 %v1408, %v1407
      %v1418 = vpack.c.bf16 %v1410, %v1409
      %v1419 = vlaneseq
      %v1420 = vshrl.u32 %v1419, 7
      %v1421 = vadd.s32 %v1420, 8
      %v1422 = vadd.s32 %v1420, 16
      %v1423 = vadd.s32 %v1420, 24
      %v1424 = vld [vmem:[%s274] sm:$0x1]
      %v1425 = vperm.slane %v1424, 0
      %vm1426 = vcmp.eq.s32.totalorder %v1420, %v1425
      %vm1427 = vcmp.eq.s32.totalorder %v1421, %v1425
      %vm1428 = vcmp.eq.s32.totalorder %v1422, %v1425
      %vm1429 = vcmp.eq.s32.totalorder %v1423, %v1425
      %v1430 = vsel %vm1426, 1, 0
      %v1431 = vsel %vm1427, 1, 0
      %v1432 = vsel %vm1428, 1, 0
      %v1433 = vsel %vm1429, 1, 0
      %v1434 = vcvt.s32.f32 %v1430
      %v1435 = vcvt.s32.f32 %v1431
      %v1436 = vcvt.s32.f32 %v1432
      %v1437 = vcvt.s32.f32 %v1433
      %v1438 = vpack.c.bf16 %v1435, %v1434
      %v1439 = vpack.c.bf16 %v1437, %v1436
      %v1440 = vld [vmem:[%s6] sm:$0xff]
      %v1441 = vld [vmem:[%s6 + $0x8] sm:$0xff]
      %v1442 = vld [vmem:[%s6 + $0x10] sm:$0xff]
      %v1443 = vld [vmem:[%s6 + $0x18] sm:$0xff]
      %1444 = vmatpush.bf16.msra.mxu0 %v1418
      %1445 = vmatpush.bf16.msra.mxu0 %v1417
      %1446 = vmatpush.bf16.msra.mxu0 %v1416
      %1447 = vmatpush.bf16.msra.mxu0 %v1415
      %1448 = vmatpush.bf16.msra.mxu0 %v1414
      %1449 = vmatpush.bf16.msra.mxu0 %v1413
      %1450 = vmatpush.bf16.msra.mxu0 %v1412
      %1451 = vmatpush.bf16.msra.mxu0 %v1411
      %1452 = vmatmul.bf16.gmra.mxu0 %v1438
      %v1453 = vpop.f32.mrf.mxu0
      %v1454 = vadd.f32 0.0, %v1453
      %v1455 = vpop.f32.mrf.mxu0
      %v1456 = vadd.f32 0.0, %v1455
      %1457 = vmatmul.bf16.gmra.mxu0 %v1439
      %v1458 = vpop.f32.mrf.mxu0
      %v1459 = vadd.f32 0.0, %v1458
      %v1460 = vpop.f32.mrf.mxu0
      %v1461 = vadd.f32 0.0, %v1460
      %1462 = vdwg.mxu0
      %v1463 = vadd.f32 %v1440, %v1454
      %v1464 = vadd.f32 %v1441, %v1456
      %v1465 = vadd.f32 %v1442, %v1459
      %v1466 = vadd.f32 %v1443, %v1461
      %1467 = vst [vmem:[%s6] sm:$0xff] %v1463
      %1468 = vst [vmem:[%s6 + $0x8] sm:$0xff] %v1464
      %1469 = vst [vmem:[%s6 + $0x10] sm:$0xff] %v1465
      %1470 = vst [vmem:[%s6 + $0x18] sm:$0xff] %v1466
      %p1471 = scmp.eq.s32.totalorder %s17, 1
      // Predicated region
      $region49: #{syntactic_gcn_forward.1} parent=43 // pred_check
        %p1472 = pneg %p1471
      $region50: #{syntactic_gcn_forward.1} parent=43 // pred_check_branch
        %1474 = sbr.rel (%p1472) target = $region52
      $region51: #{syntactic_gcn_forward.1} parent=43 // pred_region
        %v1475 = vld [vmem:[%s6] sm:$0xff]
        %v1476 = vld [vmem:[%s6 + $0x8] sm:$0xff]
        %v1477 = vld [vmem:[%s6 + $0x10] sm:$0xff]
        %v1478 = vld [vmem:[%s6 + $0x18] sm:$0xff]
        %v1479 = vld [vmem:[%s0] sm:$0xff]
        %v1480 = vld [vmem:[%s0 + $0x8] sm:$0xff]
        %v1481 = vld [vmem:[%s0 + $0x10] sm:$0xff]
        %v1482 = vld [vmem:[%s0 + $0x18] sm:$0xff]
        %v1483 = vadd.f32 %v1475, %v1479
        %v1484 = vadd.f32 %v1476, %v1480
        %v1485 = vadd.f32 %v1477, %v1481
        %v1486 = vadd.f32 %v1478, %v1482
        %v1487 = vmax.f32 %v1483, 0.0
        %v1488 = vmax.f32 %v1484, 0.0
        %v1489 = vmax.f32 %v1485, 0.0
        %v1490 = vmax.f32 %v1486, 0.0
        %1491 = vst [vmem:[%s6] sm:$0xff] %v1487
        %1492 = vst [vmem:[%s6 + $0x8] sm:$0xff] %v1488
        %1493 = vst [vmem:[%s6 + $0x10] sm:$0xff] %v1489
        %1494 = vst [vmem:[%s6 + $0x18] sm:$0xff] %v1490
      $region52: #{syntactic_gcn_forward.1} parent=43 // pred_fallthru
        _
      // Predicated region
      $region53: #{syntactic_gcn_forward.1} parent=43 // pred_check
        %p1495 = pneg %p171
      $region54: #{syntactic_gcn_forward.1} parent=43 // pred_check_branch
        %1497 = sbr.rel (%p1495) target = $region56
      $region55: #{syntactic_gcn_forward.1} parent=43 // pred_region
        _
      $region56: #{syntactic_gcn_forward.1} parent=43 // pred_fallthru
        _
      // Predicated region
      $region57: #{syntactic_gcn_forward.1} parent=43 // pred_check
        %p1498 = pneg %p171
      $region58: #{syntactic_gcn_forward.1} parent=43 // pred_check_branch
        %1500 = sbr.rel (%p1498) target = $region60
      $region59: #{syntactic_gcn_forward.1} parent=43 // pred_region
        _
      $region60: #{syntactic_gcn_forward.1} parent=43 // pred_fallthru
        _
    $region44: #{syntactic_gcn_forward.1} parent=5 // pred_fallthru
      _
    %p1501 = scmp.le.s32.totalorder 2, %s12
    // Predicated region
    $region61: #{syntactic_gcn_forward.1} parent=5 // pred_check
      %p1502 = pneg %p1501
    $region62: #{syntactic_gcn_forward.1} parent=5 // pred_check_branch
      %1504 = sbr.rel (%p1502) target = $region64
    $region63: #{syntactic_gcn_forward.1} parent=5 // pred_region
      %s1505 = ssub.s32 %s12, 2
    $region64: #{syntactic_gcn_forward.1} parent=5 // pred_fallthru
      _
  $region6: #{syntactic_gcn_forward.1} parent=0 // loop_footer
    %s16 = sadd.s32 1, %s12
  $region7: #{syntactic_gcn_forward.1} parent=0 // loop_footer_branch
    %11 = sbr.rel target = $region3
  $region8: #{syntactic_gcn_forward.1} parent=0 // loop_exit
    _

</llo_original>
